<compile_context>
chip_gen: v6e
topology: v6e:2x2x1
jax: 0.10.0
libtpu: 0.0.40
codegen_flags: <defaults>
</compile_context>

<pallas_src>
import jax
import jax.numpy as jnp
from jax.experimental import pallas as pl
from jax.experimental.pallas import tpu as pltpu

BN_EPS = 1e-5


# --------------------------------------------------------------------------
# Pure-JAX reference (mirrors the torch module structure; used only for the
# correctness check, never inside the kernel).
# --------------------------------------------------------------------------
def _dense_sage_relu_bn_ref(x, adj, w_rel, w_root, b_root, gamma, beta):
    agg = jnp.einsum('bij,bjc->bic', adj, x, preferred_element_type=jnp.float32)
    deg = jnp.sum(adj, axis=-1, keepdims=True)
    agg = agg / jnp.maximum(deg, 1.0)
    out = (jnp.einsum('bnc,ch->bnh', agg, w_rel, preferred_element_type=jnp.float32)
           + jnp.einsum('bnc,ch->bnh', x, w_root, preferred_element_type=jnp.float32)
           + b_root[None, :, :])
    out = jnp.maximum(out, 0.0)
    mean = jnp.mean(out, axis=(0, 1), keepdims=True)
    var = jnp.mean((out - mean) ** 2, axis=(0, 1), keepdims=True)
    out = (out - mean) * jax.lax.rsqrt(var + BN_EPS)
    out = out * gamma[None, :, :] + beta[None, :, :]
    return out


def _gnn_forward_ref(x, adj,
                     w_rel1, w_root1, b1, g1, be1,
                     w_rel2, w_root2, b2, g2, be2,
                     w_rel3, w_root3, b3, g3, be3,
                     lin_w, lin_b):
    x1 = _dense_sage_relu_bn_ref(x, adj, w_rel1, w_root1, b1, g1, be1)
    x2 = _dense_sage_relu_bn_ref(x1, adj, w_rel2, w_root2, b2, g2, be2)
    x3 = _dense_sage_relu_bn_ref(x2, adj, w_rel3, w_root3, b3, g3, be3)
    cat = jnp.concatenate([x1, x2, x3], axis=-1)
    y = (jnp.einsum('bnc,co->bno', cat, lin_w, preferred_element_type=jnp.float32)
         + lin_b[None, :, :])
    return jnp.maximum(y, 0.0)


# --------------------------------------------------------------------------
# Fused Pallas kernel (gridless: the whole working set is ~50 KiB, so
# everything runs as one block on a single TensorCore).
# --------------------------------------------------------------------------
def gnn_kernel(x_ref,        # (B*N, Cp)   channels zero-padded to Cp (mult. of 8)
               adj_ref,      # (B*N, B*N)  block-diagonal adjacency
               w_all_ref,    # (2*Cp + 4*H, Cmax) stacked rel/root weights
               lw_ref,       # (2*H + O, O) final Linear weight
               vecs_ref,     # (10, Cmax): b1,g1,be1,b2,g2,be2,b3,g3,be3,lin_b
               out_ref):     # (B*N, O)
    cp = x_ref.shape[1]
    o = lw_ref.shape[1]
    h = (lw_ref.shape[0] - o) // 2

    x = x_ref[...]
    adj = adj_ref[...]

    # Mean-aggregation normalization: reciprocal on (B*N, 1), then one vmul
    # broadcast over the (B*N, B*N) adjacency (reused by all three layers).
    deg = jnp.sum(adj, axis=-1, keepdims=True)
    inv_deg = 1.0 / jnp.maximum(deg, 1.0)   # exact: keeps the 1e-4 tolerance
    adj_norm = adj * inv_deg

    vecs = vecs_ref[...]
    w_all = w_all_ref[...]
    lw = lw_ref[...]

    def sage_relu_bn(hact, w_rel, w_root, b, gamma, beta):
        # hact: (B*N, C) flat activations.  Single 2-D aggregation matmul.
        agg = jnp.dot(adj_norm, hact, preferred_element_type=jnp.float32)
        out = (jnp.dot(agg, w_rel, preferred_element_type=jnp.float32)
               + jnp.dot(hact, w_root, preferred_element_type=jnp.float32)
               + b)
        out = jnp.maximum(out, 0.0)
        # BatchNorm1d over (B*N, C) rows, training-mode batch statistics.
        mean = jnp.mean(out, axis=0, keepdims=True)
        var = jnp.maximum(
            jnp.mean(out * out, axis=0, keepdims=True) - mean * mean, 0.0)
        out = (out - mean) * jax.lax.rsqrt(var + BN_EPS)
        return out * gamma + beta

    # Row offsets into the stacked weight array (all multiples of 8 sublanes).
    r0, r1, r2, r3, r4 = cp, 2 * cp, 2 * cp + h, 2 * cp + 2 * h, 2 * cp + 3 * h

    x1 = sage_relu_bn(x,
                      w_all[0:r0, :h], w_all[r0:r1, :h],
                      vecs[0:1, :h], vecs[1:2, :h], vecs[2:3, :h])
    x2 = sage_relu_bn(x1,
                      w_all[r1:r2, :h], w_all[r2:r3, :h],
                      vecs[3:4, :h], vecs[4:5, :h], vecs[5:6, :h])
    x3 = sage_relu_bn(x2,
                      w_all[r3:r4, :o], w_all[r4:r4 + h, :o],
                      vecs[6:7, :o], vecs[7:8, :o], vecs[8:9, :o])

    # Final Linear without the (2H+O)-wide concat: accumulate three matmuls
    # against contiguous row-blocks of lin.weight.
    y = (jnp.dot(x1, lw[0:h], preferred_element_type=jnp.float32)
         + jnp.dot(x2, lw[h:2 * h], preferred_element_type=jnp.float32)
         + jnp.dot(x3, lw[2 * h:2 * h + o], preferred_element_type=jnp.float32)
         + vecs[9:10, :o])
    out_ref[...] = jnp.maximum(y, 0.0)


def gnn_pallas(x, adj, packed_params):
    """x: (B, N, Cin), adj: (B, N, N), packed_params: output of pack_params()."""
    w_all, lw, vecs = packed_params
    B, N, cin = x.shape
    o = lw.shape[1]
    h = (lw.shape[0] - o) // 2
    cp = (w_all.shape[0] - 4 * h) // 2

    # Host-side layout plumbing only (no compute hoisted out of the kernel):
    #  - flatten batch/node dims and zero-pad channels to the sublane multiple
    #  - place the per-batch adjacency on a block diagonal so in-kernel
    #    aggregation is one 2-D matmul over flat activations.
    x2d = jnp.pad(x.reshape(B * N, cin), ((0, 0), (0, cp - cin)))
    adj_bd = (jnp.eye(B, dtype=adj.dtype)[:, None, :, None]
              * adj[:, :, None, :]).reshape(B * N, B * N)

    vmem = pl.BlockSpec(memory_space=pltpu.MemorySpace.VMEM)
    args = (x2d, adj_bd, w_all, lw, vecs)
    out2d = pl.pallas_call(
        gnn_kernel,
        out_shape=jax.ShapeDtypeStruct((B * N, o), jnp.float32),
        in_specs=[vmem] * len(args),
        out_specs=vmem,
    )(*args)
    return out2d.reshape(B, N, o)


# --------------------------------------------------------------------------
# Parameter construction / packing (host side).
# --------------------------------------------------------------------------
def init_params(key, in_channels, hidden_channels, out_channels):
    """Deterministic synthetic parameters with the same shapes as GNN.__init__."""
    ks = jax.random.split(key, 8)

    def lin_w(k, cin, cout):
        # stored pre-transposed as (cin, cout) so kernel does x @ W
        return jax.random.normal(k, (cin, cout), jnp.float32) * 0.1

    w_rel1 = lin_w(ks[0], in_channels, hidden_channels)
    w_root1 = lin_w(ks[1], in_channels, hidden_channels)
    b1 = jnp.zeros((1, hidden_channels), jnp.float32)
    g1 = jnp.ones((1, hidden_channels), jnp.float32)
    be1 = jnp.zeros((1, hidden_channels), jnp.float32)

    w_rel2 = lin_w(ks[2], hidden_channels, hidden_channels)
    w_root2 = lin_w(ks[3], hidden_channels, hidden_channels)
    b2 = jnp.zeros((1, hidden_channels), jnp.float32)
    g2 = jnp.ones((1, hidden_channels), jnp.float32)
    be2 = jnp.zeros((1, hidden_channels), jnp.float32)

    w_rel3 = lin_w(ks[4], hidden_channels, out_channels)
    w_root3 = lin_w(ks[5], hidden_channels, out_channels)
    b3 = jnp.zeros((1, out_channels), jnp.float32)
    g3 = jnp.ones((1, out_channels), jnp.float32)
    be3 = jnp.zeros((1, out_channels), jnp.float32)

    lin_w_ = lin_w(ks[6], 2 * hidden_channels + out_channels, out_channels)
    lin_b_ = jax.random.normal(ks[7], (1, out_channels), jnp.float32) * 0.1

    return (w_rel1, w_root1, b1, g1, be1,
            w_rel2, w_root2, b2, g2, be2,
            w_rel3, w_root3, b3, g3, be3,
            lin_w_, lin_b_)


def pack_params(params):
    """Host-side restructuring for the fused kernel:
       * stack all six rel/root weights into one array; layer-1 weights are
         zero-padded to Cp = ceil(Cin/8)*8 rows so every block offset is a
         multiple of 8 sublanes (tile-aligned, free in-kernel slices),
       * pass lin.weight as one array (row blocks 0:H, H:2H, 2H: are already
         the three concat segments),
       * pack the 10 small vectors into one (10, Cmax) array."""
    (w_rel1, w_root1, b1, g1, be1,
     w_rel2, w_root2, b2, g2, be2,
     w_rel3, w_root3, b3, g3, be3,
     lin_w_, lin_b_) = params
    cin = w_rel1.shape[0]
    h = w_rel1.shape[1]
    o = w_rel3.shape[1]
    cmax = max(h, o)
    cp = ((cin + 7) // 8) * 8

    def pad_rc(w, rows, cols):
        return jnp.pad(w, ((0, rows - w.shape[0]), (0, cols - w.shape[1])))

    w_all = jnp.concatenate([
        pad_rc(w_rel1, cp, cmax), pad_rc(w_root1, cp, cmax),
        pad_rc(w_rel2, h, cmax), pad_rc(w_root2, h, cmax),
        pad_rc(w_rel3, h, cmax), pad_rc(w_root3, h, cmax)], axis=0)

    def padv(v):
        v = v.reshape(-1)
        return jnp.pad(v, (0, cmax - v.shape[0]))

    vecs = jnp.stack([padv(b1), padv(g1), padv(be1),
                      padv(b2), padv(g2), padv(be2),
                      padv(b3), padv(g3), padv(be3),
                      padv(lin_b_)], axis=0)          # (10, cmax)

    return (w_all, lin_w_, vecs)


if __name__ == "__main__":
    B, N = 2, 16
    IN_C, HID_C, OUT_C = 4, 32, 32

    key = jax.random.PRNGKey(0)
    kx, kadj, kp = jax.random.split(key, 3)

    x = jax.random.normal(kx, (B, N, IN_C), jnp.float32)
    # random symmetric 0/1 adjacency with self-loops
    a = (jax.random.uniform(kadj, (B, N, N)) > 0.6).astype(jnp.float32)
    adj = jnp.clip(a + jnp.transpose(a, (0, 2, 1)) + jnp.eye(N)[None], 0.0, 1.0)

    params = init_params(kp, IN_C, HID_C, OUT_C)
    packed = pack_params(params)

    out = gnn_pallas(x, adj, packed)
    out = jax.block_until_ready(out)

    # Pure-JAX reference mirroring the torch module structure.
    ref = _gnn_forward_ref(x, adj, *params)
    assert out.shape == (B, N, OUT_C)
    assert jnp.allclose(out, ref, atol=1e-4, rtol=1e-4), "mismatch vs reference"

    print("KERNEL_OK")
</pallas_src>

<mosaic_0001>
module attributes {stable_mosaic.version = 11 : i64} {
  func.func @gnn_kernel(%arg0: memref<32x8xf32, #tpu.memory_space<vmem>>, %arg1: memref<32x32xf32, #tpu.memory_space<vmem>>, %arg2: memref<144x32xf32, #tpu.memory_space<vmem>>, %arg3: memref<96x32xf32, #tpu.memory_space<vmem>>, %arg4: memref<10x32xf32, #tpu.memory_space<vmem>>, %arg5: memref<32x32xf32, #tpu.memory_space<vmem>>) attributes {dimension_semantics = [], scalar_prefetch = 0 : i64, scratch_operands = 0 : i64, tpu.core_type = #tpu.core_type<tc>} {
    %c0 = arith.constant 0 : index
    %c0_0 = arith.constant 0 : index
    %0 = vector.load %arg0[%c0, %c0_0] : memref<32x8xf32, #tpu.memory_space<vmem>>, vector<32x8xf32>
    %c0_1 = arith.constant 0 : index
    %c0_2 = arith.constant 0 : index
    %1 = vector.load %arg1[%c0_1, %c0_2] : memref<32x32xf32, #tpu.memory_space<vmem>>, vector<32x32xf32>
    %cst = arith.constant dense<0.000000e+00> : vector<32xf32>
    %2 = vector.multi_reduction <add>, %1, %cst [1] : vector<32x32xf32> to vector<32xf32>
    %3 = vector.shape_cast %2 : vector<32xf32> to vector<32x1xf32>
    %cst_3 = arith.constant 1.000000e+00 : f32
    %4 = vector.broadcast %cst_3 : f32 to vector<32x1xf32>
    %5 = arith.maximumf %3, %4 : vector<32x1xf32>
    %cst_4 = arith.constant 1.000000e+00 : f32
    %6 = vector.broadcast %cst_4 : f32 to vector<32x1xf32>
    %7 = arith.divf %6, %5 : vector<32x1xf32>
    %8 = vector.broadcast %7 : vector<32x1xf32> to vector<32x32xf32>
    %9 = arith.mulf %1, %8 : vector<32x32xf32>
    %c0_5 = arith.constant 0 : index
    %c0_6 = arith.constant 0 : index
    %10 = vector.load %arg4[%c0_5, %c0_6] : memref<10x32xf32, #tpu.memory_space<vmem>>, vector<10x32xf32>
    %c0_7 = arith.constant 0 : index
    %c0_8 = arith.constant 0 : index
    %11 = vector.load %arg2[%c0_7, %c0_8] : memref<144x32xf32, #tpu.memory_space<vmem>>, vector<144x32xf32>
    %c0_9 = arith.constant 0 : index
    %c0_10 = arith.constant 0 : index
    %12 = vector.load %arg3[%c0_9, %c0_10] : memref<96x32xf32, #tpu.memory_space<vmem>>, vector<96x32xf32>
    %13 = vector.extract_strided_slice %11 {offsets = [0, 0], sizes = [8, 32], strides = [1, 1]} : vector<144x32xf32> to vector<8x32xf32>
    %14 = vector.extract_strided_slice %11 {offsets = [8, 0], sizes = [8, 32], strides = [1, 1]} : vector<144x32xf32> to vector<8x32xf32>
    %15 = vector.extract_strided_slice %10 {offsets = [0, 0], sizes = [1, 32], strides = [1, 1]} : vector<10x32xf32> to vector<1x32xf32>
    %16 = vector.extract_strided_slice %10 {offsets = [1, 0], sizes = [1, 32], strides = [1, 1]} : vector<10x32xf32> to vector<1x32xf32>
    %17 = vector.extract_strided_slice %10 {offsets = [2, 0], sizes = [1, 32], strides = [1, 1]} : vector<10x32xf32> to vector<1x32xf32>
    %cst_11 = arith.constant dense<0.000000e+00> : vector<32x8xf32>
    %18 = tpu.matmul %9, %0, %cst_11 {dimension_numbers = #tpu.dot_dimension_numbers<[1], [0], [0], [1], [0, 0, 1, 1], [], []>} : vector<32x32xf32>, vector<32x8xf32>, vector<32x8xf32> -> vector<32x8xf32>
    %cst_12 = arith.constant dense<0.000000e+00> : vector<32x32xf32>
    %19 = tpu.matmul %18, %13, %cst_12 {dimension_numbers = #tpu.dot_dimension_numbers<[1], [0], [0], [1], [0, 0, 1, 1], [], []>} : vector<32x8xf32>, vector<8x32xf32>, vector<32x32xf32> -> vector<32x32xf32>
    %cst_13 = arith.constant dense<0.000000e+00> : vector<32x32xf32>
    %20 = tpu.matmul %0, %14, %cst_13 {dimension_numbers = #tpu.dot_dimension_numbers<[1], [0], [0], [1], [0, 0, 1, 1], [], []>} : vector<32x8xf32>, vector<8x32xf32>, vector<32x32xf32> -> vector<32x32xf32>
    %21 = arith.addf %19, %20 : vector<32x32xf32>
    %22 = vector.broadcast %15 : vector<1x32xf32> to vector<32x32xf32>
    %23 = arith.addf %21, %22 : vector<32x32xf32>
    %cst_14 = arith.constant 0.000000e+00 : f32
    %24 = vector.broadcast %cst_14 : f32 to vector<32x32xf32>
    %25 = arith.maximumf %23, %24 : vector<32x32xf32>
    %cst_15 = arith.constant dense<0.000000e+00> : vector<32xf32>
    %26 = vector.multi_reduction <add>, %25, %cst_15 [0] : vector<32x32xf32> to vector<32xf32>
    %27 = vector.shape_cast %26 : vector<32xf32> to vector<1x32xf32>
    %cst_16 = arith.constant 3.200000e+01 : f32
    %28 = vector.broadcast %cst_16 : f32 to vector<1x32xf32>
    %29 = arith.divf %27, %28 : vector<1x32xf32>
    %30 = arith.mulf %25, %25 : vector<32x32xf32>
    %cst_17 = arith.constant dense<0.000000e+00> : vector<32xf32>
    %31 = vector.multi_reduction <add>, %30, %cst_17 [0] : vector<32x32xf32> to vector<32xf32>
    %32 = vector.shape_cast %31 : vector<32xf32> to vector<1x32xf32>
    %cst_18 = arith.constant 3.200000e+01 : f32
    %33 = vector.broadcast %cst_18 : f32 to vector<1x32xf32>
    %34 = arith.divf %32, %33 : vector<1x32xf32>
    %35 = arith.mulf %29, %29 : vector<1x32xf32>
    %36 = arith.subf %34, %35 : vector<1x32xf32>
    %cst_19 = arith.constant 0.000000e+00 : f32
    %37 = vector.broadcast %cst_19 : f32 to vector<1x32xf32>
    %38 = arith.maximumf %36, %37 : vector<1x32xf32>
    %39 = vector.broadcast %29 : vector<1x32xf32> to vector<32x32xf32>
    %40 = arith.subf %25, %39 : vector<32x32xf32>
    %cst_20 = arith.constant 9.99999974E-6 : f32
    %41 = vector.broadcast %cst_20 : f32 to vector<1x32xf32>
    %42 = arith.addf %38, %41 : vector<1x32xf32>
    %43 = math.rsqrt %42 : vector<1x32xf32>
    %44 = vector.broadcast %43 : vector<1x32xf32> to vector<32x32xf32>
    %45 = arith.mulf %40, %44 : vector<32x32xf32>
    %46 = vector.broadcast %16 : vector<1x32xf32> to vector<32x32xf32>
    %47 = arith.mulf %45, %46 : vector<32x32xf32>
    %48 = vector.broadcast %17 : vector<1x32xf32> to vector<32x32xf32>
    %49 = arith.addf %47, %48 : vector<32x32xf32>
    %50 = vector.extract_strided_slice %11 {offsets = [16, 0], sizes = [32, 32], strides = [1, 1]} : vector<144x32xf32> to vector<32x32xf32>
    %51 = vector.extract_strided_slice %11 {offsets = [48, 0], sizes = [32, 32], strides = [1, 1]} : vector<144x32xf32> to vector<32x32xf32>
    %52 = vector.extract_strided_slice %10 {offsets = [3, 0], sizes = [1, 32], strides = [1, 1]} : vector<10x32xf32> to vector<1x32xf32>
    %53 = vector.extract_strided_slice %10 {offsets = [4, 0], sizes = [1, 32], strides = [1, 1]} : vector<10x32xf32> to vector<1x32xf32>
    %54 = vector.extract_strided_slice %10 {offsets = [5, 0], sizes = [1, 32], strides = [1, 1]} : vector<10x32xf32> to vector<1x32xf32>
    %cst_21 = arith.constant dense<0.000000e+00> : vector<32x32xf32>
    %55 = tpu.matmul %9, %49, %cst_21 {dimension_numbers = #tpu.dot_dimension_numbers<[1], [0], [0], [1], [0, 0, 1, 1], [], []>} : vector<32x32xf32>, vector<32x32xf32>, vector<32x32xf32> -> vector<32x32xf32>
    %cst_22 = arith.constant dense<0.000000e+00> : vector<32x32xf32>
    %56 = tpu.matmul %55, %50, %cst_22 {dimension_numbers = #tpu.dot_dimension_numbers<[1], [0], [0], [1], [0, 0, 1, 1], [], []>} : vector<32x32xf32>, vector<32x32xf32>, vector<32x32xf32> -> vector<32x32xf32>
    %cst_23 = arith.constant dense<0.000000e+00> : vector<32x32xf32>
    %57 = tpu.matmul %49, %51, %cst_23 {dimension_numbers = #tpu.dot_dimension_numbers<[1], [0], [0], [1], [0, 0, 1, 1], [], []>} : vector<32x32xf32>, vector<32x32xf32>, vector<32x32xf32> -> vector<32x32xf32>
    %58 = arith.addf %56, %57 : vector<32x32xf32>
    %59 = vector.broadcast %52 : vector<1x32xf32> to vector<32x32xf32>
    %60 = arith.addf %58, %59 : vector<32x32xf32>
    %cst_24 = arith.constant 0.000000e+00 : f32
    %61 = vector.broadcast %cst_24 : f32 to vector<32x32xf32>
    %62 = arith.maximumf %60, %61 : vector<32x32xf32>
    %cst_25 = arith.constant dense<0.000000e+00> : vector<32xf32>
    %63 = vector.multi_reduction <add>, %62, %cst_25 [0] : vector<32x32xf32> to vector<32xf32>
    %64 = vector.shape_cast %63 : vector<32xf32> to vector<1x32xf32>
    %cst_26 = arith.constant 3.200000e+01 : f32
    %65 = vector.broadcast %cst_26 : f32 to vector<1x32xf32>
    %66 = arith.divf %64, %65 : vector<1x32xf32>
    %67 = arith.mulf %62, %62 : vector<32x32xf32>
    %cst_27 = arith.constant dense<0.000000e+00> : vector<32xf32>
    %68 = vector.multi_reduction <add>, %67, %cst_27 [0] : vector<32x32xf32> to vector<32xf32>
    %69 = vector.shape_cast %68 : vector<32xf32> to vector<1x32xf32>
    %cst_28 = arith.constant 3.200000e+01 : f32
    %70 = vector.broadcast %cst_28 : f32 to vector<1x32xf32>
    %71 = arith.divf %69, %70 : vector<1x32xf32>
    %72 = arith.mulf %66, %66 : vector<1x32xf32>
    %73 = arith.subf %71, %72 : vector<1x32xf32>
    %cst_29 = arith.constant 0.000000e+00 : f32
    %74 = vector.broadcast %cst_29 : f32 to vector<1x32xf32>
    %75 = arith.maximumf %73, %74 : vector<1x32xf32>
    %76 = vector.broadcast %66 : vector<1x32xf32> to vector<32x32xf32>
    %77 = arith.subf %62, %76 : vector<32x32xf32>
    %cst_30 = arith.constant 9.99999974E-6 : f32
    %78 = vector.broadcast %cst_30 : f32 to vector<1x32xf32>
    %79 = arith.addf %75, %78 : vector<1x32xf32>
    %80 = math.rsqrt %79 : vector<1x32xf32>
    %81 = vector.broadcast %80 : vector<1x32xf32> to vector<32x32xf32>
    %82 = arith.mulf %77, %81 : vector<32x32xf32>
    %83 = vector.broadcast %53 : vector<1x32xf32> to vector<32x32xf32>
    %84 = arith.mulf %82, %83 : vector<32x32xf32>
    %85 = vector.broadcast %54 : vector<1x32xf32> to vector<32x32xf32>
    %86 = arith.addf %84, %85 : vector<32x32xf32>
    %87 = vector.extract_strided_slice %11 {offsets = [80, 0], sizes = [32, 32], strides = [1, 1]} : vector<144x32xf32> to vector<32x32xf32>
    %88 = vector.extract_strided_slice %11 {offsets = [112, 0], sizes = [32, 32], strides = [1, 1]} : vector<144x32xf32> to vector<32x32xf32>
    %89 = vector.extract_strided_slice %10 {offsets = [6, 0], sizes = [1, 32], strides = [1, 1]} : vector<10x32xf32> to vector<1x32xf32>
    %90 = vector.extract_strided_slice %10 {offsets = [7, 0], sizes = [1, 32], strides = [1, 1]} : vector<10x32xf32> to vector<1x32xf32>
    %91 = vector.extract_strided_slice %10 {offsets = [8, 0], sizes = [1, 32], strides = [1, 1]} : vector<10x32xf32> to vector<1x32xf32>
    %cst_31 = arith.constant dense<0.000000e+00> : vector<32x32xf32>
    %92 = tpu.matmul %9, %86, %cst_31 {dimension_numbers = #tpu.dot_dimension_numbers<[1], [0], [0], [1], [0, 0, 1, 1], [], []>} : vector<32x32xf32>, vector<32x32xf32>, vector<32x32xf32> -> vector<32x32xf32>
    %cst_32 = arith.constant dense<0.000000e+00> : vector<32x32xf32>
    %93 = tpu.matmul %92, %87, %cst_32 {dimension_numbers = #tpu.dot_dimension_numbers<[1], [0], [0], [1], [0, 0, 1, 1], [], []>} : vector<32x32xf32>, vector<32x32xf32>, vector<32x32xf32> -> vector<32x32xf32>
    %cst_33 = arith.constant dense<0.000000e+00> : vector<32x32xf32>
    %94 = tpu.matmul %86, %88, %cst_33 {dimension_numbers = #tpu.dot_dimension_numbers<[1], [0], [0], [1], [0, 0, 1, 1], [], []>} : vector<32x32xf32>, vector<32x32xf32>, vector<32x32xf32> -> vector<32x32xf32>
    %95 = arith.addf %93, %94 : vector<32x32xf32>
    %96 = vector.broadcast %89 : vector<1x32xf32> to vector<32x32xf32>
    %97 = arith.addf %95, %96 : vector<32x32xf32>
    %cst_34 = arith.constant 0.000000e+00 : f32
    %98 = vector.broadcast %cst_34 : f32 to vector<32x32xf32>
    %99 = arith.maximumf %97, %98 : vector<32x32xf32>
    %cst_35 = arith.constant dense<0.000000e+00> : vector<32xf32>
    %100 = vector.multi_reduction <add>, %99, %cst_35 [0] : vector<32x32xf32> to vector<32xf32>
    %101 = vector.shape_cast %100 : vector<32xf32> to vector<1x32xf32>
    %cst_36 = arith.constant 3.200000e+01 : f32
    %102 = vector.broadcast %cst_36 : f32 to vector<1x32xf32>
    %103 = arith.divf %101, %102 : vector<1x32xf32>
    %104 = arith.mulf %99, %99 : vector<32x32xf32>
    %cst_37 = arith.constant dense<0.000000e+00> : vector<32xf32>
    %105 = vector.multi_reduction <add>, %104, %cst_37 [0] : vector<32x32xf32> to vector<32xf32>
    %106 = vector.shape_cast %105 : vector<32xf32> to vector<1x32xf32>
    %cst_38 = arith.constant 3.200000e+01 : f32
    %107 = vector.broadcast %cst_38 : f32 to vector<1x32xf32>
    %108 = arith.divf %106, %107 : vector<1x32xf32>
    %109 = arith.mulf %103, %103 : vector<1x32xf32>
    %110 = arith.subf %108, %109 : vector<1x32xf32>
    %cst_39 = arith.constant 0.000000e+00 : f32
    %111 = vector.broadcast %cst_39 : f32 to vector<1x32xf32>
    %112 = arith.maximumf %110, %111 : vector<1x32xf32>
    %113 = vector.broadcast %103 : vector<1x32xf32> to vector<32x32xf32>
    %114 = arith.subf %99, %113 : vector<32x32xf32>
    %cst_40 = arith.constant 9.99999974E-6 : f32
    %115 = vector.broadcast %cst_40 : f32 to vector<1x32xf32>
    %116 = arith.addf %112, %115 : vector<1x32xf32>
    %117 = math.rsqrt %116 : vector<1x32xf32>
    %118 = vector.broadcast %117 : vector<1x32xf32> to vector<32x32xf32>
    %119 = arith.mulf %114, %118 : vector<32x32xf32>
    %120 = vector.broadcast %90 : vector<1x32xf32> to vector<32x32xf32>
    %121 = arith.mulf %119, %120 : vector<32x32xf32>
    %122 = vector.broadcast %91 : vector<1x32xf32> to vector<32x32xf32>
    %123 = arith.addf %121, %122 : vector<32x32xf32>
    %124 = vector.extract_strided_slice %12 {offsets = [0, 0], sizes = [32, 32], strides = [1, 1]} : vector<96x32xf32> to vector<32x32xf32>
    %cst_41 = arith.constant dense<0.000000e+00> : vector<32x32xf32>
    %125 = tpu.matmul %49, %124, %cst_41 {dimension_numbers = #tpu.dot_dimension_numbers<[1], [0], [0], [1], [0, 0, 1, 1], [], []>} : vector<32x32xf32>, vector<32x32xf32>, vector<32x32xf32> -> vector<32x32xf32>
    %126 = vector.extract_strided_slice %12 {offsets = [32, 0], sizes = [32, 32], strides = [1, 1]} : vector<96x32xf32> to vector<32x32xf32>
    %cst_42 = arith.constant dense<0.000000e+00> : vector<32x32xf32>
    %127 = tpu.matmul %86, %126, %cst_42 {dimension_numbers = #tpu.dot_dimension_numbers<[1], [0], [0], [1], [0, 0, 1, 1], [], []>} : vector<32x32xf32>, vector<32x32xf32>, vector<32x32xf32> -> vector<32x32xf32>
    %128 = arith.addf %125, %127 : vector<32x32xf32>
    %129 = vector.extract_strided_slice %12 {offsets = [64, 0], sizes = [32, 32], strides = [1, 1]} : vector<96x32xf32> to vector<32x32xf32>
    %cst_43 = arith.constant dense<0.000000e+00> : vector<32x32xf32>
    %130 = tpu.matmul %123, %129, %cst_43 {dimension_numbers = #tpu.dot_dimension_numbers<[1], [0], [0], [1], [0, 0, 1, 1], [], []>} : vector<32x32xf32>, vector<32x32xf32>, vector<32x32xf32> -> vector<32x32xf32>
    %131 = arith.addf %128, %130 : vector<32x32xf32>
    %132 = vector.extract_strided_slice %10 {offsets = [9, 0], sizes = [1, 32], strides = [1, 1]} : vector<10x32xf32> to vector<1x32xf32>
    %133 = vector.broadcast %132 : vector<1x32xf32> to vector<32x32xf32>
    %134 = arith.addf %131, %133 : vector<32x32xf32>
    %cst_44 = arith.constant 0.000000e+00 : f32
    %135 = vector.broadcast %cst_44 : f32 to vector<32x32xf32>
    %136 = arith.maximumf %134, %135 : vector<32x32xf32>
    %c0_45 = arith.constant 0 : index
    %c0_46 = arith.constant 0 : index
    %137 = vector.load %arg5[%c0_45, %c0_46] : memref<32x32xf32, #tpu.memory_space<vmem>>, vector<32x32xf32>
    tpu.vector_store %arg5[%c0_45, %c0_46], %136 {strides = array<i32>} : memref<32x32xf32, #tpu.memory_space<vmem>>, vector<32x32xf32>,
    return
  }
}

</mosaic_0001>

<llo_original>
// kernel: tpu_custom_call.1
$region0: #{tpu_custom_call.1}
  #allocation0 [shape = 'u32[]', space=smem, size = 0x4, offset = 0x4, fixed_abs, tag = 'smem constant byte address 0x4 - core index']
  #allocation1 [shape = 'u32[144,128]{1,0:T(1,128)}', space=vmem, size = 0x12000, scoped, tag = 'internal scratch']
  %s0 = inlined_call_operand.vmem [shape: f32[32,8], index: 0, kind: input, shape index: {}]
  %s1 = inlined_call_operand.vmem [shape: f32[32,32], index: 1, kind: input, shape index: {}]
  %s2 = inlined_call_operand.vmem [shape: f32[144,32], index: 2, kind: input, shape index: {}]
  %s3 = inlined_call_operand.vmem [shape: f32[96,32], index: 3, kind: input, shape index: {}]
  %s4 = inlined_call_operand.vmem [shape: f32[10,32], index: 4, kind: input, shape index: {}]
  %s5 = inlined_call_operand.hbm [shape: f32[32,32], index: 5, kind: output, shape index: {}]
  %s6 = sld [smem:[#allocation0]]
  $region30: #{tpu_custom_call.1} parent=0
    _
  %s8 = ssub.s32 1, %s6
  %s9 = scalar_select 0, %s8, %s6
  $region1: #{tpu_custom_call.1} parent=0
    #allocation2 [shape = 'u8[16384]{0}', space=vmem, size = 0x4000, scoped, tag = 'output window, operand 0, single buffered']
    #allocation3 [shape = 's32[1]{0}', space=sflag, size = 0x4, scoped, tag = 'scoped memory for tpu_custom_call.1']
    %10 = vsyncpa [#allocation3], 0
    // Predicated region
    $region2: #{tpu_custom_call.1} parent=1 // pred_check
      _
    $region3: #{tpu_custom_call.1} parent=1 // pred_check_branch
      %12 = sbr.rel (0) target = $region5
    $region4: #{tpu_custom_call.1} parent=1 // pred_region
      _
    $region5: #{tpu_custom_call.1} parent=1 // pred_fallthru
      _
    // Predicated region
    $region6: #{tpu_custom_call.1} parent=1 // pred_check
      _
    $region7: #{tpu_custom_call.1} parent=1 // pred_check_branch
      %14 = sbr.rel (0) target = $region9
    $region8: #{tpu_custom_call.1} parent=1 // pred_region
      _
    $region9: #{tpu_custom_call.1} parent=1 // pred_fallthru
      _
    // Predicated region
    $region10: #{tpu_custom_call.1} parent=1 // pred_check
      _
    $region11: #{tpu_custom_call.1} parent=1 // pred_check_branch
      %16 = sbr.rel (0) target = $region13
    $region12: #{tpu_custom_call.1} parent=1 // pred_region
      _
    $region13: #{tpu_custom_call.1} parent=1 // pred_fallthru
      _
    // Predicated region
    $region14: #{tpu_custom_call.1} parent=1 // pred_check
      _
    $region15: #{tpu_custom_call.1} parent=1 // pred_check_branch
      %18 = sbr.rel (0) target = $region17
    $region16: #{tpu_custom_call.1} parent=1 // pred_region
      _
    $region17: #{tpu_custom_call.1} parent=1 // pred_fallthru
      _
    // Predicated region
    $region18: #{tpu_custom_call.1} parent=1 // pred_check
      _
    $region19: #{tpu_custom_call.1} parent=1 // pred_check_branch
      %20 = sbr.rel (0) target = $region21
    $region20: #{tpu_custom_call.1} parent=1 // pred_region
      _
    $region21: #{tpu_custom_call.1} parent=1 // pred_fallthru
      _
    %v21 = vld [vmem:[%s0] sm:$0xff]
    %v22 = vld [vmem:[%s0 + $0x8] sm:$0xff]
    %v23 = vld [vmem:[%s0 + $0x10] sm:$0xff]
    %v24 = vld [vmem:[%s0 + $0x18] sm:$0xff]
    %v25 = vld [vmem:[%s1] sm:$0xff]
    %v26 = vld [vmem:[%s1 + $0x8] sm:$0xff]
    %v27 = vld [vmem:[%s1 + $0x10] sm:$0xff]
    %v28 = vld [vmem:[%s1 + $0x18] sm:$0xff]
    %vm29 = vcmask 261120
    %v30 = vsel %vm29, %v25, 0.0
    %31 = vadd.xlane.f32.xlu0 %v30
    %v32 = vpop.xlane.xlu0 %31
    %v33 = vsel %vm29, %v26, 0.0
    %34 = vadd.xlane.f32.xlu0 %v33
    %v35 = vpop.xlane.xlu0 %34
    %v36 = vsel %vm29, %v27, 0.0
    %37 = vadd.xlane.f32.xlu0 %v36
    %v38 = vpop.xlane.xlu0 %37
    %v39 = vsel %vm29, %v28, 0.0
    %40 = vadd.xlane.f32.xlu0 %v39
    %v41 = vpop.xlane.xlu0 %40
    %v42 = vmax.f32 %v32, 1.0
    %v43 = vmax.f32 %v35, 1.0
    %v44 = vmax.f32 %v38, 1.0
    %v45 = vmax.f32 %v41, 1.0
    %v46 = vrcp.pop %v42
    %v47 = vmul.f32 1.0, %v46
    %v48 = vrcp.pop %v43
    %v49 = vmul.f32 1.0, %v48
    %v50 = vrcp.pop %v44
    %v51 = vmul.f32 1.0, %v50
    %v52 = vrcp.pop %v45
    %v53 = vmul.f32 1.0, %v52
    %v54 = vmul.f32 %v25, %v47
    %v55 = vmul.f32 %v26, %v49
    %v56 = vmul.f32 %v27, %v51
    %v57 = vmul.f32 %v28, %v53
    %v58 = vld [vmem:[%s4] sm:$0xff]
    %v59 = vld [vmem:[%s4 + $0x8] sm:$0x3]
    %v60 = vld [vmem:[%s2] sm:$0xff]
    %v61 = vld [vmem:[%s2 + $0x8] sm:$0xff]
    %v62 = vld [vmem:[%s2 + $0x10] sm:$0xff]
    %v63 = vld [vmem:[%s2 + $0x18] sm:$0xff]
    %v64 = vld [vmem:[%s2 + $0x20] sm:$0xff]
    %v65 = vld [vmem:[%s2 + $0x28] sm:$0xff]
    %v66 = vld [vmem:[%s2 + $0x30] sm:$0xff]
    %v67 = vld [vmem:[%s2 + $0x38] sm:$0xff]
    %v68 = vld [vmem:[%s2 + $0x40] sm:$0xff]
    %v69 = vld [vmem:[%s2 + $0x48] sm:$0xff]
    %v70 = vld [vmem:[%s2 + $0x50] sm:$0xff]
    %v71 = vld [vmem:[%s2 + $0x58] sm:$0xff]
    %v72 = vld [vmem:[%s2 + $0x60] sm:$0xff]
    %v73 = vld [vmem:[%s2 + $0x68] sm:$0xff]
    %v74 = vld [vmem:[%s2 + $0x70] sm:$0xff]
    %v75 = vld [vmem:[%s2 + $0x78] sm:$0xff]
    %v76 = vld [vmem:[%s2 + $0x80] sm:$0xff]
    %v77 = vld [vmem:[%s2 + $0x88] sm:$0xff]
    %v78 = vld [vmem:[%s3] sm:$0xff]
    %v79 = vld [vmem:[%s3 + $0x8] sm:$0xff]
    %v80 = vld [vmem:[%s3 + $0x10] sm:$0xff]
    %v81 = vld [vmem:[%s3 + $0x18] sm:$0xff]
    %v82 = vld [vmem:[%s3 + $0x20] sm:$0xff]
    %v83 = vld [vmem:[%s3 + $0x28] sm:$0xff]
    %v84 = vld [vmem:[%s3 + $0x30] sm:$0xff]
    %v85 = vld [vmem:[%s3 + $0x38] sm:$0xff]
    %v86 = vld [vmem:[%s3 + $0x40] sm:$0xff]
    %v87 = vld [vmem:[%s3 + $0x48] sm:$0xff]
    %v88 = vld [vmem:[%s3 + $0x50] sm:$0xff]
    %v89 = vld [vmem:[%s3 + $0x58] sm:$0xff]
    %v91 = vsel %vm29, %v54, 0
    %v94 = vsel %vm29, %v55, 0
    %v97 = vsel %vm29, %v56, 0
    %v100 = vsel %vm29, %v57, 0
    %102 = vmatprep.subr.mxu0 0.0
    %103 = vmatpush1.msra.mxu0 0.0
    %104 = vmatprep.subr.mxu0 0.0
    %105 = vmatpush1.msra.mxu0 0.0
    %106 = vmatprep.subr.mxu0 0.0
    %107 = vmatpush1.msra.mxu0 0.0
    %108 = vmatprep.subr.mxu0 0.0
    %109 = vmatpush1.msra.mxu0 0.0
    %110 = vmatprep.subr.mxu0 0.0
    %111 = vmatpush1.msra.mxu0 0.0
    %112 = vmatprep.subr.mxu0 0.0
    %113 = vmatpush1.msra.mxu0 0.0
    %114 = vmatprep.subr.mxu0 0.0
    %115 = vmatpush1.msra.mxu0 0.0
    %116 = vmatprep.subr.mxu0 0.0
    %117 = vmatpush1.msra.mxu0 0.0
    %118 = vmatprep.subr.mxu0 0.0
    %119 = vmatpush1.msra.mxu0 0.0
    %120 = vmatprep.subr.mxu0 0.0
    %121 = vmatpush1.msra.mxu0 0.0
    %122 = vmatprep.subr.mxu0 0.0
    %123 = vmatpush1.msra.mxu0 0.0
    %124 = vmatprep.subr.mxu0 0.0
    %125 = vmatpush1.msra.mxu0 0.0
    %126 = vmatprep.subr.mxu0 0.0
    %127 = vmatpush1.msra.mxu0 %v24
    %128 = vmatprep.subr.mxu0 0.0
    %129 = vmatpush1.msra.mxu0 %v23
    %130 = vmatprep.subr.mxu0 0.0
    %131 = vmatpush1.msra.mxu0 %v22
    %132 = vmatprep.subr.mxu0 0.0
    %133 = vmatpush1.msra.mxu0 %v21
    %134 = vmatprep.subr.mxu0 0.0
    %135 = vmatpush2.msra.mxu0 0.0
    %136 = vmatprep.subr.mxu0 0.0
    %137 = vmatpush2.msra.mxu0 0.0
    %138 = vmatprep.subr.mxu0 0.0
    %139 = vmatpush2.msra.mxu0 0.0
    %140 = vmatprep.subr.mxu0 0.0
    %141 = vmatpush2.msra.mxu0 0.0
    %142 = vmatprep.subr.mxu0 0.0
    %143 = vmatpush2.msra.mxu0 0.0
    %144 = vmatprep.subr.mxu0 0.0
    %145 = vmatpush2.msra.mxu0 0.0
    %146 = vmatprep.subr.mxu0 0.0
    %147 = vmatpush2.msra.mxu0 0.0
    %148 = vmatprep.subr.mxu0 0.0
    %149 = vmatpush2.msra.mxu0 0.0
    %150 = vmatprep.subr.mxu0 0.0
    %151 = vmatpush2.msra.mxu0 0.0
    %152 = vmatprep.subr.mxu0 0.0
    %153 = vmatpush2.msra.mxu0 0.0
    %154 = vmatprep.subr.mxu0 0.0
    %155 = vmatpush2.msra.mxu0 0.0
    %156 = vmatprep.subr.mxu0 0.0
    %157 = vmatpush2.msra.mxu0 0.0
    %158 = vmatprep.subr.mxu0 0.0
    %159 = vmatpush2.msra.mxu0 0.0
    %160 = vmatprep.subr.mxu0 0.0
    %161 = vmatpush2.msra.mxu0 0.0
    %162 = vmatprep.subr.mxu0 0.0
    %163 = vmatpush2.msra.mxu0 0.0
    %164 = vmatprep.subr.mxu0 0.0
    %165 = vmatpush2.msra.mxu0 0.0
    %166 = vmatprep.mubr.f32.mxu0 0.0
    %167 = vmatmul.mubr.f32.gmra.mxu0 %v91
    %v168 = vpop.f32.mrf.mxu0
    %v169 = vadd.f32 0.0, %v168
    %v170 = vpop.f32.mrf.mxu0
    %171 = vmatprep.mubr.f32.mxu0 0.0
    %172 = vmatmul.mubr.f32.gmra.mxu0 %v94
    %v173 = vpop.f32.mrf.mxu0
    %v174 = vadd.f32 0.0, %v173
    %v175 = vpop.f32.mrf.mxu0
    %176 = vmatprep.mubr.f32.mxu0 0.0
    %177 = vmatmul.mubr.f32.gmra.mxu0 %v97
    %v178 = vpop.f32.mrf.mxu0
    %v179 = vadd.f32 0.0, %v178
    %v180 = vpop.f32.mrf.mxu0
    %181 = vmatprep.mubr.f32.mxu0 0.0
    %182 = vmatmul.mubr.f32.gmra.mxu0 %v100
    %v183 = vpop.f32.mrf.mxu0
    %v184 = vadd.f32 0.0, %v183
    %v185 = vpop.f32.mrf.mxu0
    %186 = vdwg.mxu0
    %vm187 = vcmask 64512
    %v189 = vsel %vm187, %v21, 0
    %v192 = vsel %vm187, %v22, 0
    %v195 = vsel %vm187, %v23, 0
    %v198 = vsel %vm187, %v24, 0
    %200 = vmatprep.subr.mxu0 0.0
    %201 = vmatpush1.msra.mxu0 0.0
    %202 = vmatprep.subr.mxu0 0.0
    %203 = vmatpush1.msra.mxu0 0.0
    %204 = vmatprep.subr.mxu0 0.0
    %205 = vmatpush1.msra.mxu0 0.0
    %206 = vmatprep.subr.mxu0 0.0
    %207 = vmatpush1.msra.mxu0 0.0
    %208 = vmatprep.subr.mxu0 0.0
    %209 = vmatpush1.msra.mxu0 0.0
    %210 = vmatprep.subr.mxu0 0.0
    %211 = vmatpush1.msra.mxu0 0.0
    %212 = vmatprep.subr.mxu0 0.0
    %213 = vmatpush1.msra.mxu0 0.0
    %214 = vmatprep.subr.mxu0 0.0
    %215 = vmatpush1.msra.mxu0 0.0
    %216 = vmatprep.subr.mxu0 0.0
    %217 = vmatpush1.msra.mxu0 0.0
    %218 = vmatprep.subr.mxu0 0.0
    %219 = vmatpush1.msra.mxu0 0.0
    %220 = vmatprep.subr.mxu0 0.0
    %221 = vmatpush1.msra.mxu0 0.0
    %222 = vmatprep.subr.mxu0 0.0
    %223 = vmatpush1.msra.mxu0 0.0
    %224 = vmatprep.subr.mxu0 0.0
    %225 = vmatpush1.msra.mxu0 0.0
    %226 = vmatprep.subr.mxu0 0.0
    %227 = vmatpush1.msra.mxu0 0.0
    %228 = vmatprep.subr.mxu0 0.0
    %229 = vmatpush1.msra.mxu0 0.0
    %230 = vmatprep.subr.mxu0 0.0
    %231 = vmatpush1.msra.mxu0 %v61
    %232 = vmatprep.subr.mxu0 0.0
    %233 = vmatpush2.msra.mxu0 0.0
    %234 = vmatprep.subr.mxu0 0.0
    %235 = vmatpush2.msra.mxu0 0.0
    %236 = vmatprep.subr.mxu0 0.0
    %237 = vmatpush2.msra.mxu0 0.0
    %238 = vmatprep.subr.mxu0 0.0
    %239 = vmatpush2.msra.mxu0 0.0
    %240 = vmatprep.subr.mxu0 0.0
    %241 = vmatpush2.msra.mxu0 0.0
    %242 = vmatprep.subr.mxu0 0.0
    %243 = vmatpush2.msra.mxu0 0.0
    %244 = vmatprep.subr.mxu0 0.0
    %245 = vmatpush2.msra.mxu0 0.0
    %246 = vmatprep.subr.mxu0 0.0
    %247 = vmatpush2.msra.mxu0 0.0
    %248 = vmatprep.subr.mxu0 0.0
    %249 = vmatpush2.msra.mxu0 0.0
    %250 = vmatprep.subr.mxu0 0.0
    %251 = vmatpush2.msra.mxu0 0.0
    %252 = vmatprep.subr.mxu0 0.0
    %253 = vmatpush2.msra.mxu0 0.0
    %254 = vmatprep.subr.mxu0 0.0
    %255 = vmatpush2.msra.mxu0 0.0
    %256 = vmatprep.subr.mxu0 0.0
    %257 = vmatpush2.msra.mxu0 0.0
    %258 = vmatprep.subr.mxu0 0.0
    %259 = vmatpush2.msra.mxu0 0.0
    %260 = vmatprep.subr.mxu0 0.0
    %261 = vmatpush2.msra.mxu0 0.0
    %262 = vmatprep.subr.mxu0 0.0
    %263 = vmatpush2.msra.mxu0 0.0
    %264 = vmatprep.mubr.f32.mxu0 0.0
    %265 = vmatmul.mubr.f32.gmra.mxu0 %v189
    %v266 = vpop.f32.mrf.mxu0
    %v267 = vadd.f32 0.0, %v266
    %v268 = vpop.f32.mrf.mxu0
    %269 = vmatprep.mubr.f32.mxu0 0.0
    %270 = vmatmul.mubr.f32.gmra.mxu0 %v192
    %v271 = vpop.f32.mrf.mxu0
    %v272 = vadd.f32 0.0, %v271
    %v273 = vpop.f32.mrf.mxu0
    %274 = vmatprep.mubr.f32.mxu0 0.0
    %275 = vmatmul.mubr.f32.gmra.mxu0 %v195
    %v276 = vpop.f32.mrf.mxu0
    %v277 = vadd.f32 0.0, %v276
    %v278 = vpop.f32.mrf.mxu0
    %279 = vmatprep.mubr.f32.mxu0 0.0
    %280 = vmatmul.mubr.f32.gmra.mxu0 %v198
    %v281 = vpop.f32.mrf.mxu0
    %v282 = vadd.f32 0.0, %v281
    %v283 = vpop.f32.mrf.mxu0
    %284 = vdwg.mxu0
    %v286 = vsel %vm187, %v169, 0
    %v289 = vsel %vm187, %v174, 0
    %v292 = vsel %vm187, %v179, 0
    %v295 = vsel %vm187, %v184, 0
    %297 = vmatprep.subr.mxu0 0.0
    %298 = vmatpush1.msra.mxu0 0.0
    %299 = vmatprep.subr.mxu0 0.0
    %300 = vmatpush1.msra.mxu0 0.0
    %301 = vmatprep.subr.mxu0 0.0
    %302 = vmatpush1.msra.mxu0 0.0
    %303 = vmatprep.subr.mxu0 0.0
    %304 = vmatpush1.msra.mxu0 0.0
    %305 = vmatprep.subr.mxu0 0.0
    %306 = vmatpush1.msra.mxu0 0.0
    %307 = vmatprep.subr.mxu0 0.0
    %308 = vmatpush1.msra.mxu0 0.0
    %309 = vmatprep.subr.mxu0 0.0
    %310 = vmatpush1.msra.mxu0 0.0
    %311 = vmatprep.subr.mxu0 0.0
    %312 = vmatpush1.msra.mxu0 0.0
    %313 = vmatprep.subr.mxu0 0.0
    %314 = vmatpush1.msra.mxu0 0.0
    %315 = vmatprep.subr.mxu0 0.0
    %316 = vmatpush1.msra.mxu0 0.0
    %317 = vmatprep.subr.mxu0 0.0
    %318 = vmatpush1.msra.mxu0 0.0
    %319 = vmatprep.subr.mxu0 0.0
    %320 = vmatpush1.msra.mxu0 0.0
    %321 = vmatprep.subr.mxu0 0.0
    %322 = vmatpush1.msra.mxu0 0.0
    %323 = vmatprep.subr.mxu0 0.0
    %324 = vmatpush1.msra.mxu0 0.0
    %325 = vmatprep.subr.mxu0 0.0
    %326 = vmatpush1.msra.mxu0 0.0
    %327 = vmatprep.subr.mxu0 0.0
    %328 = vmatpush1.msra.mxu0 %v60
    %329 = vmatprep.subr.mxu0 0.0
    %330 = vmatpush2.msra.mxu0 0.0
    %331 = vmatprep.subr.mxu0 0.0
    %332 = vmatpush2.msra.mxu0 0.0
    %333 = vmatprep.subr.mxu0 0.0
    %334 = vmatpush2.msra.mxu0 0.0
    %335 = vmatprep.subr.mxu0 0.0
    %336 = vmatpush2.msra.mxu0 0.0
    %337 = vmatprep.subr.mxu0 0.0
    %338 = vmatpush2.msra.mxu0 0.0
    %339 = vmatprep.subr.mxu0 0.0
    %340 = vmatpush2.msra.mxu0 0.0
    %341 = vmatprep.subr.mxu0 0.0
    %342 = vmatpush2.msra.mxu0 0.0
    %343 = vmatprep.subr.mxu0 0.0
    %344 = vmatpush2.msra.mxu0 0.0
    %345 = vmatprep.subr.mxu0 0.0
    %346 = vmatpush2.msra.mxu0 0.0
    %347 = vmatprep.subr.mxu0 0.0
    %348 = vmatpush2.msra.mxu0 0.0
    %349 = vmatprep.subr.mxu0 0.0
    %350 = vmatpush2.msra.mxu0 0.0
    %351 = vmatprep.subr.mxu0 0.0
    %352 = vmatpush2.msra.mxu0 0.0
    %353 = vmatprep.subr.mxu0 0.0
    %354 = vmatpush2.msra.mxu0 0.0
    %355 = vmatprep.subr.mxu0 0.0
    %356 = vmatpush2.msra.mxu0 0.0
    %357 = vmatprep.subr.mxu0 0.0
    %358 = vmatpush2.msra.mxu0 0.0
    %359 = vmatprep.subr.mxu0 0.0
    %360 = vmatpush2.msra.mxu0 0.0
    %361 = vmatprep.mubr.f32.mxu0 0.0
    %362 = vmatmul.mubr.f32.gmra.mxu0 %v286
    %v363 = vpop.f32.mrf.mxu0
    %v364 = vadd.f32 %v267, %v363
    %v365 = vpop.f32.mrf.mxu0
    %366 = vmatprep.mubr.f32.mxu0 0.0
    %367 = vmatmul.mubr.f32.gmra.mxu0 %v289
    %v368 = vpop.f32.mrf.mxu0
    %v369 = vadd.f32 %v272, %v368
    %v370 = vpop.f32.mrf.mxu0
    %371 = vmatprep.mubr.f32.mxu0 0.0
    %372 = vmatmul.mubr.f32.gmra.mxu0 %v292
    %v373 = vpop.f32.mrf.mxu0
    %v374 = vadd.f32 %v277, %v373
    %v375 = vpop.f32.mrf.mxu0
    %376 = vmatprep.mubr.f32.mxu0 0.0
    %377 = vmatmul.mubr.f32.gmra.mxu0 %v295
    %v378 = vpop.f32.mrf.mxu0
    %v379 = vadd.f32 %v282, %v378
    %v380 = vpop.f32.mrf.mxu0
    %381 = vdwg.mxu0
    %v382 = vlaneseq
    %v383 = vshrl.u32 %v382, 7
    %v384 = vsub.s32 0, %v383
    %v385 = vrot.slane %v58, %v384
    %v386 = vadd.f32 %v364, %v385
    %v387 = vadd.f32 %v369, %v385
    %v388 = vadd.f32 %v374, %v385
    %v389 = vadd.f32 %v379, %v385
    %v390 = vmax.f32 %v386, 0.0
    %v391 = vmax.f32 %v387, 0.0
    %v392 = vmax.f32 %v388, 0.0
    %v393 = vmax.f32 %v389, 0.0
    %v394 = vsel %vm29, %v390, 0.0
    %v395 = vsel %vm29, %v391, 0.0
    %v396 = vadd.f32 %v394, %v395
    %v397 = vsel %vm29, %v392, 0.0
    %v398 = vadd.f32 %v396, %v397
    %v399 = vsel %vm29, %v393, 0.0
    %v400 = vadd.f32 %v398, %v399
    %v401 = vrot.slane %v400, 4
    %v402 = vadd.f32 %v400, %v401
    %v403 = vrot.slane %v402, 2
    %v404 = vadd.f32 %v402, %v403
    %v405 = vrot.slane %v404, 1
    %v406 = vadd.f32 %v404, %v405
    %v407 = vrcp.pop 32.0
    %v408 = vmul.f32 %v406, %v407
    %v409 = vmul.f32 %v390, %v390
    %v410 = vmul.f32 %v391, %v391
    %v411 = vmul.f32 %v392, %v392
    %v412 = vmul.f32 %v393, %v393
    %v413 = vsel %vm29, %v409, 0.0
    %v414 = vsel %vm29, %v410, 0.0
    %v415 = vadd.f32 %v413, %v414
    %v416 = vsel %vm29, %v411, 0.0
    %v417 = vadd.f32 %v415, %v416
    %v418 = vsel %vm29, %v412, 0.0
    %v419 = vadd.f32 %v417, %v418
    %v420 = vrot.slane %v419, 4
    %v421 = vadd.f32 %v419, %v420
    %v422 = vrot.slane %v421, 2
    %v423 = vadd.f32 %v421, %v422
    %v424 = vrot.slane %v423, 1
    %v425 = vadd.f32 %v423, %v424
    %v426 = vmul.f32 %v425, %v407
    %v427 = vmul.f32 %v408, %v408
    %v428 = vsub.f32 %v426, %v427
    %v429 = vmax.f32 %v428, 0.0
    %v430 = vsub.f32 %v390, %v408
    %v431 = vsub.f32 %v391, %v408
    %v432 = vsub.f32 %v392, %v408
    %v433 = vsub.f32 %v393, %v408
    %v434 = vadd.f32 %v429, 1e-05
    %v435 = vrsqrt.pop %v434
    %v436 = vmul.f32 %v430, %v435
    %v437 = vmul.f32 %v431, %v435
    %v438 = vmul.f32 %v432, %v435
    %v439 = vmul.f32 %v433, %v435
    %v440 = vlaneseq
    %v441 = vshrl.u32 %v440, 7
    %v442 = vsub.s32 1, %v441
    %v443 = vrot.slane %v58, %v442
    %v444 = vmul.f32 %v436, %v443
    %v445 = vmul.f32 %v437, %v443
    %v446 = vmul.f32 %v438, %v443
    %v447 = vmul.f32 %v439, %v443
    %v448 = vlaneseq
    %v449 = vshrl.u32 %v448, 7
    %v450 = vsub.s32 2, %v449
    %v451 = vrot.slane %v58, %v450
    %v452 = vadd.f32 %v444, %v451
    %v453 = vadd.f32 %v445, %v451
    %v454 = vadd.f32 %v446, %v451
    %v455 = vadd.f32 %v447, %v451
    %456 = vmatprep.subr.mxu0 0.0
    %457 = vmatpush1.msra.mxu0 0.0
    %458 = vmatprep.subr.mxu0 0.0
    %459 = vmatpush1.msra.mxu0 0.0
    %460 = vmatprep.subr.mxu0 0.0
    %461 = vmatpush1.msra.mxu0 0.0
    %462 = vmatprep.subr.mxu0 0.0
    %463 = vmatpush1.msra.mxu0 0.0
    %464 = vmatprep.subr.mxu0 0.0
    %465 = vmatpush1.msra.mxu0 0.0
    %466 = vmatprep.subr.mxu0 0.0
    %467 = vmatpush1.msra.mxu0 0.0
    %468 = vmatprep.subr.mxu0 0.0
    %469 = vmatpush1.msra.mxu0 0.0
    %470 = vmatprep.subr.mxu0 0.0
    %471 = vmatpush1.msra.mxu0 0.0
    %472 = vmatprep.subr.mxu0 0.0
    %473 = vmatpush1.msra.mxu0 0.0
    %474 = vmatprep.subr.mxu0 0.0
    %475 = vmatpush1.msra.mxu0 0.0
    %476 = vmatprep.subr.mxu0 0.0
    %477 = vmatpush1.msra.mxu0 0.0
    %478 = vmatprep.subr.mxu0 0.0
    %479 = vmatpush1.msra.mxu0 0.0
    %480 = vmatprep.subr.mxu0 0.0
    %481 = vmatpush1.msra.mxu0 %v455
    %482 = vmatprep.subr.mxu0 0.0
    %483 = vmatpush1.msra.mxu0 %v454
    %484 = vmatprep.subr.mxu0 0.0
    %485 = vmatpush1.msra.mxu0 %v453
    %486 = vmatprep.subr.mxu0 0.0
    %487 = vmatpush1.msra.mxu0 %v452
    %488 = vmatprep.subr.mxu0 0.0
    %489 = vmatpush2.msra.mxu0 0.0
    %490 = vmatprep.subr.mxu0 0.0
    %491 = vmatpush2.msra.mxu0 0.0
    %492 = vmatprep.subr.mxu0 0.0
    %493 = vmatpush2.msra.mxu0 0.0
    %494 = vmatprep.subr.mxu0 0.0
    %495 = vmatpush2.msra.mxu0 0.0
    %496 = vmatprep.subr.mxu0 0.0
    %497 = vmatpush2.msra.mxu0 0.0
    %498 = vmatprep.subr.mxu0 0.0
    %499 = vmatpush2.msra.mxu0 0.0
    %500 = vmatprep.subr.mxu0 0.0
    %501 = vmatpush2.msra.mxu0 0.0
    %502 = vmatprep.subr.mxu0 0.0
    %503 = vmatpush2.msra.mxu0 0.0
    %504 = vmatprep.subr.mxu0 0.0
    %505 = vmatpush2.msra.mxu0 0.0
    %506 = vmatprep.subr.mxu0 0.0
    %507 = vmatpush2.msra.mxu0 0.0
    %508 = vmatprep.subr.mxu0 0.0
    %509 = vmatpush2.msra.mxu0 0.0
    %510 = vmatprep.subr.mxu0 0.0
    %511 = vmatpush2.msra.mxu0 0.0
    %512 = vmatprep.subr.mxu0 0.0
    %513 = vmatpush2.msra.mxu0 0.0
    %514 = vmatprep.subr.mxu0 0.0
    %515 = vmatpush2.msra.mxu0 0.0
    %516 = vmatprep.subr.mxu0 0.0
    %517 = vmatpush2.msra.mxu0 0.0
    %518 = vmatprep.subr.mxu0 0.0
    %519 = vmatpush2.msra.mxu0 0.0
    %520 = vmatprep.mubr.f32.mxu0 0.0
    %521 = vmatmul.mubr.f32.gmra.mxu0 %v91
    %v522 = vpop.f32.mrf.mxu0
    %v523 = vadd.f32 0.0, %v522
    %v524 = vpop.f32.mrf.mxu0
    %525 = vmatprep.mubr.f32.mxu0 0.0
    %526 = vmatmul.mubr.f32.gmra.mxu0 %v94
    %v527 = vpop.f32.mrf.mxu0
    %v528 = vadd.f32 0.0, %v527
    %v529 = vpop.f32.mrf.mxu0
    %530 = vmatprep.mubr.f32.mxu0 0.0
    %531 = vmatmul.mubr.f32.gmra.mxu0 %v97
    %v532 = vpop.f32.mrf.mxu0
    %v533 = vadd.f32 0.0, %v532
    %v534 = vpop.f32.mrf.mxu0
    %535 = vmatprep.mubr.f32.mxu0 0.0
    %536 = vmatmul.mubr.f32.gmra.mxu0 %v100
    %v537 = vpop.f32.mrf.mxu0
    %v538 = vadd.f32 0.0, %v537
    %v539 = vpop.f32.mrf.mxu0
    %540 = vdwg.mxu0
    %v542 = vsel %vm29, %v452, 0
    %v545 = vsel %vm29, %v453, 0
    %v548 = vsel %vm29, %v454, 0
    %v551 = vsel %vm29, %v455, 0
    %553 = vmatprep.subr.mxu0 0.0
    %554 = vmatpush1.msra.mxu0 0.0
    %555 = vmatprep.subr.mxu0 0.0
    %556 = vmatpush1.msra.mxu0 0.0
    %557 = vmatprep.subr.mxu0 0.0
    %558 = vmatpush1.msra.mxu0 0.0
    %559 = vmatprep.subr.mxu0 0.0
    %560 = vmatpush1.msra.mxu0 0.0
    %561 = vmatprep.subr.mxu0 0.0
    %562 = vmatpush1.msra.mxu0 0.0
    %563 = vmatprep.subr.mxu0 0.0
    %564 = vmatpush1.msra.mxu0 0.0
    %565 = vmatprep.subr.mxu0 0.0
    %566 = vmatpush1.msra.mxu0 0.0
    %567 = vmatprep.subr.mxu0 0.0
    %568 = vmatpush1.msra.mxu0 0.0
    %569 = vmatprep.subr.mxu0 0.0
    %570 = vmatpush1.msra.mxu0 0.0
    %571 = vmatprep.subr.mxu0 0.0
    %572 = vmatpush1.msra.mxu0 0.0
    %573 = vmatprep.subr.mxu0 0.0
    %574 = vmatpush1.msra.mxu0 0.0
    %575 = vmatprep.subr.mxu0 0.0
    %576 = vmatpush1.msra.mxu0 0.0
    %577 = vmatprep.subr.mxu0 0.0
    %578 = vmatpush1.msra.mxu0 %v69
    %579 = vmatprep.subr.mxu0 0.0
    %580 = vmatpush1.msra.mxu0 %v68
    %581 = vmatprep.subr.mxu0 0.0
    %582 = vmatpush1.msra.mxu0 %v67
    %583 = vmatprep.subr.mxu0 0.0
    %584 = vmatpush1.msra.mxu0 %v66
    %585 = vmatprep.subr.mxu0 0.0
    %586 = vmatpush2.msra.mxu0 0.0
    %587 = vmatprep.subr.mxu0 0.0
    %588 = vmatpush2.msra.mxu0 0.0
    %589 = vmatprep.subr.mxu0 0.0
    %590 = vmatpush2.msra.mxu0 0.0
    %591 = vmatprep.subr.mxu0 0.0
    %592 = vmatpush2.msra.mxu0 0.0
    %593 = vmatprep.subr.mxu0 0.0
    %594 = vmatpush2.msra.mxu0 0.0
    %595 = vmatprep.subr.mxu0 0.0
    %596 = vmatpush2.msra.mxu0 0.0
    %597 = vmatprep.subr.mxu0 0.0
    %598 = vmatpush2.msra.mxu0 0.0
    %599 = vmatprep.subr.mxu0 0.0
    %600 = vmatpush2.msra.mxu0 0.0
    %601 = vmatprep.subr.mxu0 0.0
    %602 = vmatpush2.msra.mxu0 0.0
    %603 = vmatprep.subr.mxu0 0.0
    %604 = vmatpush2.msra.mxu0 0.0
    %605 = vmatprep.subr.mxu0 0.0
    %606 = vmatpush2.msra.mxu0 0.0
    %607 = vmatprep.subr.mxu0 0.0
    %608 = vmatpush2.msra.mxu0 0.0
    %609 = vmatprep.subr.mxu0 0.0
    %610 = vmatpush2.msra.mxu0 0.0
    %611 = vmatprep.subr.mxu0 0.0
    %612 = vmatpush2.msra.mxu0 0.0
    %613 = vmatprep.subr.mxu0 0.0
    %614 = vmatpush2.msra.mxu0 0.0
    %615 = vmatprep.subr.mxu0 0.0
    %616 = vmatpush2.msra.mxu0 0.0
    %617 = vmatprep.mubr.f32.mxu0 0.0
    %618 = vmatmul.mubr.f32.gmra.mxu0 %v542
    %v619 = vpop.f32.mrf.mxu0
    %v620 = vadd.f32 0.0, %v619
    %v621 = vpop.f32.mrf.mxu0
    %622 = vmatprep.mubr.f32.mxu0 0.0
    %623 = vmatmul.mubr.f32.gmra.mxu0 %v545
    %v624 = vpop.f32.mrf.mxu0
    %v625 = vadd.f32 0.0, %v624
    %v626 = vpop.f32.mrf.mxu0
    %627 = vmatprep.mubr.f32.mxu0 0.0
    %628 = vmatmul.mubr.f32.gmra.mxu0 %v548
    %v629 = vpop.f32.mrf.mxu0
    %v630 = vadd.f32 0.0, %v629
    %v631 = vpop.f32.mrf.mxu0
    %632 = vmatprep.mubr.f32.mxu0 0.0
    %633 = vmatmul.mubr.f32.gmra.mxu0 %v551
    %v634 = vpop.f32.mrf.mxu0
    %v635 = vadd.f32 0.0, %v634
    %v636 = vpop.f32.mrf.mxu0
    %637 = vdwg.mxu0
    %v639 = vsel %vm29, %v523, 0
    %v642 = vsel %vm29, %v528, 0
    %v645 = vsel %vm29, %v533, 0
    %v648 = vsel %vm29, %v538, 0
    %650 = vmatprep.subr.mxu0 0.0
    %651 = vmatpush1.msra.mxu0 0.0
    %652 = vmatprep.subr.mxu0 0.0
    %653 = vmatpush1.msra.mxu0 0.0
    %654 = vmatprep.subr.mxu0 0.0
    %655 = vmatpush1.msra.mxu0 0.0
    %656 = vmatprep.subr.mxu0 0.0
    %657 = vmatpush1.msra.mxu0 0.0
    %658 = vmatprep.subr.mxu0 0.0
    %659 = vmatpush1.msra.mxu0 0.0
    %660 = vmatprep.subr.mxu0 0.0
    %661 = vmatpush1.msra.mxu0 0.0
    %662 = vmatprep.subr.mxu0 0.0
    %663 = vmatpush1.msra.mxu0 0.0
    %664 = vmatprep.subr.mxu0 0.0
    %665 = vmatpush1.msra.mxu0 0.0
    %666 = vmatprep.subr.mxu0 0.0
    %667 = vmatpush1.msra.mxu0 0.0
    %668 = vmatprep.subr.mxu0 0.0
    %669 = vmatpush1.msra.mxu0 0.0
    %670 = vmatprep.subr.mxu0 0.0
    %671 = vmatpush1.msra.mxu0 0.0
    %672 = vmatprep.subr.mxu0 0.0
    %673 = vmatpush1.msra.mxu0 0.0
    %674 = vmatprep.subr.mxu0 0.0
    %675 = vmatpush1.msra.mxu0 %v65
    %676 = vmatprep.subr.mxu0 0.0
    %677 = vmatpush1.msra.mxu0 %v64
    %678 = vmatprep.subr.mxu0 0.0
    %679 = vmatpush1.msra.mxu0 %v63
    %680 = vmatprep.subr.mxu0 0.0
    %681 = vmatpush1.msra.mxu0 %v62
    %682 = vmatprep.subr.mxu0 0.0
    %683 = vmatpush2.msra.mxu0 0.0
    %684 = vmatprep.subr.mxu0 0.0
    %685 = vmatpush2.msra.mxu0 0.0
    %686 = vmatprep.subr.mxu0 0.0
    %687 = vmatpush2.msra.mxu0 0.0
    %688 = vmatprep.subr.mxu0 0.0
    %689 = vmatpush2.msra.mxu0 0.0
    %690 = vmatprep.subr.mxu0 0.0
    %691 = vmatpush2.msra.mxu0 0.0
    %692 = vmatprep.subr.mxu0 0.0
    %693 = vmatpush2.msra.mxu0 0.0
    %694 = vmatprep.subr.mxu0 0.0
    %695 = vmatpush2.msra.mxu0 0.0
    %696 = vmatprep.subr.mxu0 0.0
    %697 = vmatpush2.msra.mxu0 0.0
    %698 = vmatprep.subr.mxu0 0.0
    %699 = vmatpush2.msra.mxu0 0.0
    %700 = vmatprep.subr.mxu0 0.0
    %701 = vmatpush2.msra.mxu0 0.0
    %702 = vmatprep.subr.mxu0 0.0
    %703 = vmatpush2.msra.mxu0 0.0
    %704 = vmatprep.subr.mxu0 0.0
    %705 = vmatpush2.msra.mxu0 0.0
    %706 = vmatprep.subr.mxu0 0.0
    %707 = vmatpush2.msra.mxu0 0.0
    %708 = vmatprep.subr.mxu0 0.0
    %709 = vmatpush2.msra.mxu0 0.0
    %710 = vmatprep.subr.mxu0 0.0
    %711 = vmatpush2.msra.mxu0 0.0
    %712 = vmatprep.subr.mxu0 0.0
    %713 = vmatpush2.msra.mxu0 0.0
    %714 = vmatprep.mubr.f32.mxu0 0.0
    %715 = vmatmul.mubr.f32.gmra.mxu0 %v639
    %v716 = vpop.f32.mrf.mxu0
    %v717 = vadd.f32 %v620, %v716
    %v718 = vpop.f32.mrf.mxu0
    %719 = vmatprep.mubr.f32.mxu0 0.0
    %720 = vmatmul.mubr.f32.gmra.mxu0 %v642
    %v721 = vpop.f32.mrf.mxu0
    %v722 = vadd.f32 %v625, %v721
    %v723 = vpop.f32.mrf.mxu0
    %724 = vmatprep.mubr.f32.mxu0 0.0
    %725 = vmatmul.mubr.f32.gmra.mxu0 %v645
    %v726 = vpop.f32.mrf.mxu0
    %v727 = vadd.f32 %v630, %v726
    %v728 = vpop.f32.mrf.mxu0
    %729 = vmatprep.mubr.f32.mxu0 0.0
    %730 = vmatmul.mubr.f32.gmra.mxu0 %v648
    %v731 = vpop.f32.mrf.mxu0
    %v732 = vadd.f32 %v635, %v731
    %v733 = vpop.f32.mrf.mxu0
    %734 = vdwg.mxu0
    %v735 = vlaneseq
    %v736 = vshrl.u32 %v735, 7
    %v737 = vsub.s32 3, %v736
    %v738 = vrot.slane %v58, %v737
    %v739 = vadd.f32 %v717, %v738
    %v740 = vadd.f32 %v722, %v738
    %v741 = vadd.f32 %v727, %v738
    %v742 = vadd.f32 %v732, %v738
    %v743 = vmax.f32 %v739, 0.0
    %v744 = vmax.f32 %v740, 0.0
    %v745 = vmax.f32 %v741, 0.0
    %v746 = vmax.f32 %v742, 0.0
    %v747 = vsel %vm29, %v743, 0.0
    %v748 = vsel %vm29, %v744, 0.0
    %v749 = vadd.f32 %v747, %v748
    %v750 = vsel %vm29, %v745, 0.0
    %v751 = vadd.f32 %v749, %v750
    %v752 = vsel %vm29, %v746, 0.0
    %v753 = vadd.f32 %v751, %v752
    %v754 = vrot.slane %v753, 4
    %v755 = vadd.f32 %v753, %v754
    %v756 = vrot.slane %v755, 2
    %v757 = vadd.f32 %v755, %v756
    %v758 = vrot.slane %v757, 1
    %v759 = vadd.f32 %v757, %v758
    %v760 = vmul.f32 %v759, %v407
    %v761 = vmul.f32 %v743, %v743
    %v762 = vmul.f32 %v744, %v744
    %v763 = vmul.f32 %v745, %v745
    %v764 = vmul.f32 %v746, %v746
    %v765 = vsel %vm29, %v761, 0.0
    %v766 = vsel %vm29, %v762, 0.0
    %v767 = vadd.f32 %v765, %v766
    %v768 = vsel %vm29, %v763, 0.0
    %v769 = vadd.f32 %v767, %v768
    %v770 = vsel %vm29, %v764, 0.0
    %v771 = vadd.f32 %v769, %v770
    %v772 = vrot.slane %v771, 4
    %v773 = vadd.f32 %v771, %v772
    %v774 = vrot.slane %v773, 2
    %v775 = vadd.f32 %v773, %v774
    %v776 = vrot.slane %v775, 1
    %v777 = vadd.f32 %v775, %v776
    %v778 = vmul.f32 %v777, %v407
    %v779 = vmul.f32 %v760, %v760
    %v780 = vsub.f32 %v778, %v779
    %v781 = vmax.f32 %v780, 0.0
    %v782 = vsub.f32 %v743, %v760
    %v783 = vsub.f32 %v744, %v760
    %v784 = vsub.f32 %v745, %v760
    %v785 = vsub.f32 %v746, %v760
    %v786 = vadd.f32 %v781, 1e-05
    %v787 = vrsqrt.pop %v786
    %v788 = vmul.f32 %v782, %v787
    %v789 = vmul.f32 %v783, %v787
    %v790 = vmul.f32 %v784, %v787
    %v791 = vmul.f32 %v785, %v787
    %v792 = vlaneseq
    %v793 = vshrl.u32 %v792, 7
    %v794 = vsub.s32 4, %v793
    %v795 = vrot.slane %v58, %v794
    %v796 = vmul.f32 %v788, %v795
    %v797 = vmul.f32 %v789, %v795
    %v798 = vmul.f32 %v790, %v795
    %v799 = vmul.f32 %v791, %v795
    %v800 = vlaneseq
    %v801 = vshrl.u32 %v800, 7
    %v802 = vsub.s32 5, %v801
    %v803 = vrot.slane %v58, %v802
    %v804 = vadd.f32 %v796, %v803
    %v805 = vadd.f32 %v797, %v803
    %v806 = vadd.f32 %v798, %v803
    %v807 = vadd.f32 %v799, %v803
    %808 = vmatprep.subr.mxu0 0.0
    %809 = vmatpush1.msra.mxu0 0.0
    %810 = vmatprep.subr.mxu0 0.0
    %811 = vmatpush1.msra.mxu0 0.0
    %812 = vmatprep.subr.mxu0 0.0
    %813 = vmatpush1.msra.mxu0 0.0
    %814 = vmatprep.subr.mxu0 0.0
    %815 = vmatpush1.msra.mxu0 0.0
    %816 = vmatprep.subr.mxu0 0.0
    %817 = vmatpush1.msra.mxu0 0.0
    %818 = vmatprep.subr.mxu0 0.0
    %819 = vmatpush1.msra.mxu0 0.0
    %820 = vmatprep.subr.mxu0 0.0
    %821 = vmatpush1.msra.mxu0 0.0
    %822 = vmatprep.subr.mxu0 0.0
    %823 = vmatpush1.msra.mxu0 0.0
    %824 = vmatprep.subr.mxu0 0.0
    %825 = vmatpush1.msra.mxu0 0.0
    %826 = vmatprep.subr.mxu0 0.0
    %827 = vmatpush1.msra.mxu0 0.0
    %828 = vmatprep.subr.mxu0 0.0
    %829 = vmatpush1.msra.mxu0 0.0
    %830 = vmatprep.subr.mxu0 0.0
    %831 = vmatpush1.msra.mxu0 0.0
    %832 = vmatprep.subr.mxu0 0.0
    %833 = vmatpush1.msra.mxu0 %v807
    %834 = vmatprep.subr.mxu0 0.0
    %835 = vmatpush1.msra.mxu0 %v806
    %836 = vmatprep.subr.mxu0 0.0
    %837 = vmatpush1.msra.mxu0 %v805
    %838 = vmatprep.subr.mxu0 0.0
    %839 = vmatpush1.msra.mxu0 %v804
    %840 = vmatprep.subr.mxu0 0.0
    %841 = vmatpush2.msra.mxu0 0.0
    %842 = vmatprep.subr.mxu0 0.0
    %843 = vmatpush2.msra.mxu0 0.0
    %844 = vmatprep.subr.mxu0 0.0
    %845 = vmatpush2.msra.mxu0 0.0
    %846 = vmatprep.subr.mxu0 0.0
    %847 = vmatpush2.msra.mxu0 0.0
    %848 = vmatprep.subr.mxu0 0.0
    %849 = vmatpush2.msra.mxu0 0.0
    %850 = vmatprep.subr.mxu0 0.0
    %851 = vmatpush2.msra.mxu0 0.0
    %852 = vmatprep.subr.mxu0 0.0
    %853 = vmatpush2.msra.mxu0 0.0
    %854 = vmatprep.subr.mxu0 0.0
    %855 = vmatpush2.msra.mxu0 0.0
    %856 = vmatprep.subr.mxu0 0.0
    %857 = vmatpush2.msra.mxu0 0.0
    %858 = vmatprep.subr.mxu0 0.0
    %859 = vmatpush2.msra.mxu0 0.0
    %860 = vmatprep.subr.mxu0 0.0
    %861 = vmatpush2.msra.mxu0 0.0
    %862 = vmatprep.subr.mxu0 0.0
    %863 = vmatpush2.msra.mxu0 0.0
    %864 = vmatprep.subr.mxu0 0.0
    %865 = vmatpush2.msra.mxu0 0.0
    %866 = vmatprep.subr.mxu0 0.0
    %867 = vmatpush2.msra.mxu0 0.0
    %868 = vmatprep.subr.mxu0 0.0
    %869 = vmatpush2.msra.mxu0 0.0
    %870 = vmatprep.subr.mxu0 0.0
    %871 = vmatpush2.msra.mxu0 0.0
    %872 = vmatprep.mubr.f32.mxu0 0.0
    %873 = vmatmul.mubr.f32.gmra.mxu0 %v91
    %v874 = vpop.f32.mrf.mxu0
    %v875 = vadd.f32 0.0, %v874
    %v876 = vpop.f32.mrf.mxu0
    %877 = vmatprep.mubr.f32.mxu0 0.0
    %878 = vmatmul.mubr.f32.gmra.mxu0 %v94
    %v879 = vpop.f32.mrf.mxu0
    %v880 = vadd.f32 0.0, %v879
    %v881 = vpop.f32.mrf.mxu0
    %882 = vmatprep.mubr.f32.mxu0 0.0
    %883 = vmatmul.mubr.f32.gmra.mxu0 %v97
    %v884 = vpop.f32.mrf.mxu0
    %v885 = vadd.f32 0.0, %v884
    %v886 = vpop.f32.mrf.mxu0
    %887 = vmatprep.mubr.f32.mxu0 0.0
    %888 = vmatmul.mubr.f32.gmra.mxu0 %v100
    %v889 = vpop.f32.mrf.mxu0
    %v890 = vadd.f32 0.0, %v889
    %v891 = vpop.f32.mrf.mxu0
    %892 = vdwg.mxu0
    %v894 = vsel %vm29, %v804, 0
    %v897 = vsel %vm29, %v805, 0
    %v900 = vsel %vm29, %v806, 0
    %v903 = vsel %vm29, %v807, 0
    %905 = vmatprep.subr.mxu0 0.0
    %906 = vmatpush1.msra.mxu0 0.0
    %907 = vmatprep.subr.mxu0 0.0
    %908 = vmatpush1.msra.mxu0 0.0
    %909 = vmatprep.subr.mxu0 0.0
    %910 = vmatpush1.msra.mxu0 0.0
    %911 = vmatprep.subr.mxu0 0.0
    %912 = vmatpush1.msra.mxu0 0.0
    %913 = vmatprep.subr.mxu0 0.0
    %914 = vmatpush1.msra.mxu0 0.0
    %915 = vmatprep.subr.mxu0 0.0
    %916 = vmatpush1.msra.mxu0 0.0
    %917 = vmatprep.subr.mxu0 0.0
    %918 = vmatpush1.msra.mxu0 0.0
    %919 = vmatprep.subr.mxu0 0.0
    %920 = vmatpush1.msra.mxu0 0.0
    %921 = vmatprep.subr.mxu0 0.0
    %922 = vmatpush1.msra.mxu0 0.0
    %923 = vmatprep.subr.mxu0 0.0
    %924 = vmatpush1.msra.mxu0 0.0
    %925 = vmatprep.subr.mxu0 0.0
    %926 = vmatpush1.msra.mxu0 0.0
    %927 = vmatprep.subr.mxu0 0.0
    %928 = vmatpush1.msra.mxu0 0.0
    %929 = vmatprep.subr.mxu0 0.0
    %930 = vmatpush1.msra.mxu0 %v77
    %931 = vmatprep.subr.mxu0 0.0
    %932 = vmatpush1.msra.mxu0 %v76
    %933 = vmatprep.subr.mxu0 0.0
    %934 = vmatpush1.msra.mxu0 %v75
    %935 = vmatprep.subr.mxu0 0.0
    %936 = vmatpush1.msra.mxu0 %v74
    %937 = vmatprep.subr.mxu0 0.0
    %938 = vmatpush2.msra.mxu0 0.0
    %939 = vmatprep.subr.mxu0 0.0
    %940 = vmatpush2.msra.mxu0 0.0
    %941 = vmatprep.subr.mxu0 0.0
    %942 = vmatpush2.msra.mxu0 0.0
    %943 = vmatprep.subr.mxu0 0.0
    %944 = vmatpush2.msra.mxu0 0.0
    %945 = vmatprep.subr.mxu0 0.0
    %946 = vmatpush2.msra.mxu0 0.0
    %947 = vmatprep.subr.mxu0 0.0
    %948 = vmatpush2.msra.mxu0 0.0
    %949 = vmatprep.subr.mxu0 0.0
    %950 = vmatpush2.msra.mxu0 0.0
    %951 = vmatprep.subr.mxu0 0.0
    %952 = vmatpush2.msra.mxu0 0.0
    %953 = vmatprep.subr.mxu0 0.0
    %954 = vmatpush2.msra.mxu0 0.0
    %955 = vmatprep.subr.mxu0 0.0
    %956 = vmatpush2.msra.mxu0 0.0
    %957 = vmatprep.subr.mxu0 0.0
    %958 = vmatpush2.msra.mxu0 0.0
    %959 = vmatprep.subr.mxu0 0.0
    %960 = vmatpush2.msra.mxu0 0.0
    %961 = vmatprep.subr.mxu0 0.0
    %962 = vmatpush2.msra.mxu0 0.0
    %963 = vmatprep.subr.mxu0 0.0
    %964 = vmatpush2.msra.mxu0 0.0
    %965 = vmatprep.subr.mxu0 0.0
    %966 = vmatpush2.msra.mxu0 0.0
    %967 = vmatprep.subr.mxu0 0.0
    %968 = vmatpush2.msra.mxu0 0.0
    %969 = vmatprep.mubr.f32.mxu0 0.0
    %970 = vmatmul.mubr.f32.gmra.mxu0 %v894
    %v971 = vpop.f32.mrf.mxu0
    %v972 = vadd.f32 0.0, %v971
    %v973 = vpop.f32.mrf.mxu0
    %974 = vmatprep.mubr.f32.mxu0 0.0
    %975 = vmatmul.mubr.f32.gmra.mxu0 %v897
    %v976 = vpop.f32.mrf.mxu0
    %v977 = vadd.f32 0.0, %v976
    %v978 = vpop.f32.mrf.mxu0
    %979 = vmatprep.mubr.f32.mxu0 0.0
    %980 = vmatmul.mubr.f32.gmra.mxu0 %v900
    %v981 = vpop.f32.mrf.mxu0
    %v982 = vadd.f32 0.0, %v981
    %v983 = vpop.f32.mrf.mxu0
    %984 = vmatprep.mubr.f32.mxu0 0.0
    %985 = vmatmul.mubr.f32.gmra.mxu0 %v903
    %v986 = vpop.f32.mrf.mxu0
    %v987 = vadd.f32 0.0, %v986
    %v988 = vpop.f32.mrf.mxu0
    %989 = vdwg.mxu0
    %v991 = vsel %vm29, %v875, 0
    %v994 = vsel %vm29, %v880, 0
    %v997 = vsel %vm29, %v885, 0
    %v1000 = vsel %vm29, %v890, 0
    %1002 = vmatprep.subr.mxu0 0.0
    %1003 = vmatpush1.msra.mxu0 0.0
    %1004 = vmatprep.subr.mxu0 0.0
    %1005 = vmatpush1.msra.mxu0 0.0
    %1006 = vmatprep.subr.mxu0 0.0
    %1007 = vmatpush1.msra.mxu0 0.0
    %1008 = vmatprep.subr.mxu0 0.0
    %1009 = vmatpush1.msra.mxu0 0.0
    %1010 = vmatprep.subr.mxu0 0.0
    %1011 = vmatpush1.msra.mxu0 0.0
    %1012 = vmatprep.subr.mxu0 0.0
    %1013 = vmatpush1.msra.mxu0 0.0
    %1014 = vmatprep.subr.mxu0 0.0
    %1015 = vmatpush1.msra.mxu0 0.0
    %1016 = vmatprep.subr.mxu0 0.0
    %1017 = vmatpush1.msra.mxu0 0.0
    %1018 = vmatprep.subr.mxu0 0.0
    %1019 = vmatpush1.msra.mxu0 0.0
    %1020 = vmatprep.subr.mxu0 0.0
    %1021 = vmatpush1.msra.mxu0 0.0
    %1022 = vmatprep.subr.mxu0 0.0
    %1023 = vmatpush1.msra.mxu0 0.0
    %1024 = vmatprep.subr.mxu0 0.0
    %1025 = vmatpush1.msra.mxu0 0.0
    %1026 = vmatprep.subr.mxu0 0.0
    %1027 = vmatpush1.msra.mxu0 %v73
    %1028 = vmatprep.subr.mxu0 0.0
    %1029 = vmatpush1.msra.mxu0 %v72
    %1030 = vmatprep.subr.mxu0 0.0
    %1031 = vmatpush1.msra.mxu0 %v71
    %1032 = vmatprep.subr.mxu0 0.0
    %1033 = vmatpush1.msra.mxu0 %v70
    %1034 = vmatprep.subr.mxu0 0.0
    %1035 = vmatpush2.msra.mxu0 0.0
    %1036 = vmatprep.subr.mxu0 0.0
    %1037 = vmatpush2.msra.mxu0 0.0
    %1038 = vmatprep.subr.mxu0 0.0
    %1039 = vmatpush2.msra.mxu0 0.0
    %1040 = vmatprep.subr.mxu0 0.0
    %1041 = vmatpush2.msra.mxu0 0.0
    %1042 = vmatprep.subr.mxu0 0.0
    %1043 = vmatpush2.msra.mxu0 0.0
    %1044 = vmatprep.subr.mxu0 0.0
    %1045 = vmatpush2.msra.mxu0 0.0
    %1046 = vmatprep.subr.mxu0 0.0
    %1047 = vmatpush2.msra.mxu0 0.0
    %1048 = vmatprep.subr.mxu0 0.0
    %1049 = vmatpush2.msra.mxu0 0.0
    %1050 = vmatprep.subr.mxu0 0.0
    %1051 = vmatpush2.msra.mxu0 0.0
    %1052 = vmatprep.subr.mxu0 0.0
    %1053 = vmatpush2.msra.mxu0 0.0
    %1054 = vmatprep.subr.mxu0 0.0
    %1055 = vmatpush2.msra.mxu0 0.0
    %1056 = vmatprep.subr.mxu0 0.0
    %1057 = vmatpush2.msra.mxu0 0.0
    %1058 = vmatprep.subr.mxu0 0.0
    %1059 = vmatpush2.msra.mxu0 0.0
    %1060 = vmatprep.subr.mxu0 0.0
    %1061 = vmatpush2.msra.mxu0 0.0
    %1062 = vmatprep.subr.mxu0 0.0
    %1063 = vmatpush2.msra.mxu0 0.0
    %1064 = vmatprep.subr.mxu0 0.0
    %1065 = vmatpush2.msra.mxu0 0.0
    %1066 = vmatprep.mubr.f32.mxu0 0.0
    %1067 = vmatmul.mubr.f32.gmra.mxu0 %v991
    %v1068 = vpop.f32.mrf.mxu0
    %v1069 = vadd.f32 %v972, %v1068
    %v1070 = vpop.f32.mrf.mxu0
    %1071 = vmatprep.mubr.f32.mxu0 0.0
    %1072 = vmatmul.mubr.f32.gmra.mxu0 %v994
    %v1073 = vpop.f32.mrf.mxu0
    %v1074 = vadd.f32 %v977, %v1073
    %v1075 = vpop.f32.mrf.mxu0
    %1076 = vmatprep.mubr.f32.mxu0 0.0
    %1077 = vmatmul.mubr.f32.gmra.mxu0 %v997
    %v1078 = vpop.f32.mrf.mxu0
    %v1079 = vadd.f32 %v982, %v1078
    %v1080 = vpop.f32.mrf.mxu0
    %1081 = vmatprep.mubr.f32.mxu0 0.0
    %1082 = vmatmul.mubr.f32.gmra.mxu0 %v1000
    %v1083 = vpop.f32.mrf.mxu0
    %v1084 = vadd.f32 %v987, %v1083
    %v1085 = vpop.f32.mrf.mxu0
    %1086 = vdwg.mxu0
    %v1087 = vlaneseq
    %v1088 = vshrl.u32 %v1087, 7
    %v1089 = vsub.s32 6, %v1088
    %v1090 = vrot.slane %v58, %v1089
    %v1091 = vadd.f32 %v1069, %v1090
    %v1092 = vadd.f32 %v1074, %v1090
    %v1093 = vadd.f32 %v1079, %v1090
    %v1094 = vadd.f32 %v1084, %v1090
    %v1095 = vmax.f32 %v1091, 0.0
    %v1096 = vmax.f32 %v1092, 0.0
    %v1097 = vmax.f32 %v1093, 0.0
    %v1098 = vmax.f32 %v1094, 0.0
    %v1099 = vsel %vm29, %v1095, 0.0
    %v1100 = vsel %vm29, %v1096, 0.0
    %v1101 = vadd.f32 %v1099, %v1100
    %v1102 = vsel %vm29, %v1097, 0.0
    %v1103 = vadd.f32 %v1101, %v1102
    %v1104 = vsel %vm29, %v1098, 0.0
    %v1105 = vadd.f32 %v1103, %v1104
    %v1106 = vrot.slane %v1105, 4
    %v1107 = vadd.f32 %v1105, %v1106
    %v1108 = vrot.slane %v1107, 2
    %v1109 = vadd.f32 %v1107, %v1108
    %v1110 = vrot.slane %v1109, 1
    %v1111 = vadd.f32 %v1109, %v1110
    %v1112 = vmul.f32 %v1111, %v407
    %v1113 = vmul.f32 %v1095, %v1095
    %v1114 = vmul.f32 %v1096, %v1096
    %v1115 = vmul.f32 %v1097, %v1097
    %v1116 = vmul.f32 %v1098, %v1098
    %v1117 = vsel %vm29, %v1113, 0.0
    %v1118 = vsel %vm29, %v1114, 0.0
    %v1119 = vadd.f32 %v1117, %v1118
    %v1120 = vsel %vm29, %v1115, 0.0
    %v1121 = vadd.f32 %v1119, %v1120
    %v1122 = vsel %vm29, %v1116, 0.0
    %v1123 = vadd.f32 %v1121, %v1122
    %v1124 = vrot.slane %v1123, 4
    %v1125 = vadd.f32 %v1123, %v1124
    %v1126 = vrot.slane %v1125, 2
    %v1127 = vadd.f32 %v1125, %v1126
    %v1128 = vrot.slane %v1127, 1
    %v1129 = vadd.f32 %v1127, %v1128
    %v1130 = vmul.f32 %v1129, %v407
    %v1131 = vmul.f32 %v1112, %v1112
    %v1132 = vsub.f32 %v1130, %v1131
    %v1133 = vmax.f32 %v1132, 0.0
    %v1134 = vsub.f32 %v1095, %v1112
    %v1135 = vsub.f32 %v1096, %v1112
    %v1136 = vsub.f32 %v1097, %v1112
    %v1137 = vsub.f32 %v1098, %v1112
    %v1138 = vadd.f32 %v1133, 1e-05
    %v1139 = vrsqrt.pop %v1138
    %v1140 = vmul.f32 %v1134, %v1139
    %v1141 = vmul.f32 %v1135, %v1139
    %v1142 = vmul.f32 %v1136, %v1139
    %v1143 = vmul.f32 %v1137, %v1139
    %v1144 = vlaneseq
    %v1145 = vshrl.u32 %v1144, 7
    %v1146 = vsub.s32 7, %v1145
    %v1147 = vrot.slane %v58, %v1146
    %v1148 = vmul.f32 %v1140, %v1147
    %v1149 = vmul.f32 %v1141, %v1147
    %v1150 = vmul.f32 %v1142, %v1147
    %v1151 = vmul.f32 %v1143, %v1147
    %v1152 = vlaneseq
    %v1153 = vshrl.u32 %v1152, 7
    %v1154 = vsub.s32 0, %v1153
    %v1155 = vrot.slane %v59, %v1154
    %v1156 = vadd.f32 %v1148, %v1155
    %v1157 = vadd.f32 %v1149, %v1155
    %v1158 = vadd.f32 %v1150, %v1155
    %v1159 = vadd.f32 %v1151, %v1155
    %1160 = vmatprep.subr.mxu0 0.0
    %1161 = vmatpush1.msra.mxu0 0.0
    %1162 = vmatprep.subr.mxu0 0.0
    %1163 = vmatpush1.msra.mxu0 0.0
    %1164 = vmatprep.subr.mxu0 0.0
    %1165 = vmatpush1.msra.mxu0 0.0
    %1166 = vmatprep.subr.mxu0 0.0
    %1167 = vmatpush1.msra.mxu0 0.0
    %1168 = vmatprep.subr.mxu0 0.0
    %1169 = vmatpush1.msra.mxu0 0.0
    %1170 = vmatprep.subr.mxu0 0.0
    %1171 = vmatpush1.msra.mxu0 0.0
    %1172 = vmatprep.subr.mxu0 0.0
    %1173 = vmatpush1.msra.mxu0 0.0
    %1174 = vmatprep.subr.mxu0 0.0
    %1175 = vmatpush1.msra.mxu0 0.0
    %1176 = vmatprep.subr.mxu0 0.0
    %1177 = vmatpush1.msra.mxu0 0.0
    %1178 = vmatprep.subr.mxu0 0.0
    %1179 = vmatpush1.msra.mxu0 0.0
    %1180 = vmatprep.subr.mxu0 0.0
    %1181 = vmatpush1.msra.mxu0 0.0
    %1182 = vmatprep.subr.mxu0 0.0
    %1183 = vmatpush1.msra.mxu0 0.0
    %1184 = vmatprep.subr.mxu0 0.0
    %1185 = vmatpush1.msra.mxu0 %v85
    %1186 = vmatprep.subr.mxu0 0.0
    %1187 = vmatpush1.msra.mxu0 %v84
    %1188 = vmatprep.subr.mxu0 0.0
    %1189 = vmatpush1.msra.mxu0 %v83
    %1190 = vmatprep.subr.mxu0 0.0
    %1191 = vmatpush1.msra.mxu0 %v82
    %1192 = vmatprep.subr.mxu0 0.0
    %1193 = vmatpush2.msra.mxu0 0.0
    %1194 = vmatprep.subr.mxu0 0.0
    %1195 = vmatpush2.msra.mxu0 0.0
    %1196 = vmatprep.subr.mxu0 0.0
    %1197 = vmatpush2.msra.mxu0 0.0
    %1198 = vmatprep.subr.mxu0 0.0
    %1199 = vmatpush2.msra.mxu0 0.0
    %1200 = vmatprep.subr.mxu0 0.0
    %1201 = vmatpush2.msra.mxu0 0.0
    %1202 = vmatprep.subr.mxu0 0.0
    %1203 = vmatpush2.msra.mxu0 0.0
    %1204 = vmatprep.subr.mxu0 0.0
    %1205 = vmatpush2.msra.mxu0 0.0
    %1206 = vmatprep.subr.mxu0 0.0
    %1207 = vmatpush2.msra.mxu0 0.0
    %1208 = vmatprep.subr.mxu0 0.0
    %1209 = vmatpush2.msra.mxu0 0.0
    %1210 = vmatprep.subr.mxu0 0.0
    %1211 = vmatpush2.msra.mxu0 0.0
    %1212 = vmatprep.subr.mxu0 0.0
    %1213 = vmatpush2.msra.mxu0 0.0
    %1214 = vmatprep.subr.mxu0 0.0
    %1215 = vmatpush2.msra.mxu0 0.0
    %1216 = vmatprep.subr.mxu0 0.0
    %1217 = vmatpush2.msra.mxu0 0.0
    %1218 = vmatprep.subr.mxu0 0.0
    %1219 = vmatpush2.msra.mxu0 0.0
    %1220 = vmatprep.subr.mxu0 0.0
    %1221 = vmatpush2.msra.mxu0 0.0
    %1222 = vmatprep.subr.mxu0 0.0
    %1223 = vmatpush2.msra.mxu0 0.0
    %1224 = vmatprep.mubr.f32.mxu0 0.0
    %1225 = vmatmul.mubr.f32.gmra.mxu0 %v894
    %v1226 = vpop.f32.mrf.mxu0
    %v1227 = vadd.f32 0.0, %v1226
    %v1228 = vpop.f32.mrf.mxu0
    %1229 = vmatprep.mubr.f32.mxu0 0.0
    %1230 = vmatmul.mubr.f32.gmra.mxu0 %v897
    %v1231 = vpop.f32.mrf.mxu0
    %v1232 = vadd.f32 0.0, %v1231
    %v1233 = vpop.f32.mrf.mxu0
    %1234 = vmatprep.mubr.f32.mxu0 0.0
    %1235 = vmatmul.mubr.f32.gmra.mxu0 %v900
    %v1236 = vpop.f32.mrf.mxu0
    %v1237 = vadd.f32 0.0, %v1236
    %v1238 = vpop.f32.mrf.mxu0
    %1239 = vmatprep.mubr.f32.mxu0 0.0
    %1240 = vmatmul.mubr.f32.gmra.mxu0 %v903
    %v1241 = vpop.f32.mrf.mxu0
    %v1242 = vadd.f32 0.0, %v1241
    %v1243 = vpop.f32.mrf.mxu0
    %1244 = vdwg.mxu0
    %1245 = vmatprep.subr.mxu0 0.0
    %1246 = vmatpush1.msra.mxu0 0.0
    %1247 = vmatprep.subr.mxu0 0.0
    %1248 = vmatpush1.msra.mxu0 0.0
    %1249 = vmatprep.subr.mxu0 0.0
    %1250 = vmatpush1.msra.mxu0 0.0
    %1251 = vmatprep.subr.mxu0 0.0
    %1252 = vmatpush1.msra.mxu0 0.0
    %1253 = vmatprep.subr.mxu0 0.0
    %1254 = vmatpush1.msra.mxu0 0.0
    %1255 = vmatprep.subr.mxu0 0.0
    %1256 = vmatpush1.msra.mxu0 0.0
    %1257 = vmatprep.subr.mxu0 0.0
    %1258 = vmatpush1.msra.mxu0 0.0
    %1259 = vmatprep.subr.mxu0 0.0
    %1260 = vmatpush1.msra.mxu0 0.0
    %1261 = vmatprep.subr.mxu0 0.0
    %1262 = vmatpush1.msra.mxu0 0.0
    %1263 = vmatprep.subr.mxu0 0.0
    %1264 = vmatpush1.msra.mxu0 0.0
    %1265 = vmatprep.subr.mxu0 0.0
    %1266 = vmatpush1.msra.mxu0 0.0
    %1267 = vmatprep.subr.mxu0 0.0
    %1268 = vmatpush1.msra.mxu0 0.0
    %1269 = vmatprep.subr.mxu0 0.0
    %1270 = vmatpush1.msra.mxu0 %v81
    %1271 = vmatprep.subr.mxu0 0.0
    %1272 = vmatpush1.msra.mxu0 %v80
    %1273 = vmatprep.subr.mxu0 0.0
    %1274 = vmatpush1.msra.mxu0 %v79
    %1275 = vmatprep.subr.mxu0 0.0
    %1276 = vmatpush1.msra.mxu0 %v78
    %1277 = vmatprep.subr.mxu0 0.0
    %1278 = vmatpush2.msra.mxu0 0.0
    %1279 = vmatprep.subr.mxu0 0.0
    %1280 = vmatpush2.msra.mxu0 0.0
    %1281 = vmatprep.subr.mxu0 0.0
    %1282 = vmatpush2.msra.mxu0 0.0
    %1283 = vmatprep.subr.mxu0 0.0
    %1284 = vmatpush2.msra.mxu0 0.0
    %1285 = vmatprep.subr.mxu0 0.0
    %1286 = vmatpush2.msra.mxu0 0.0
    %1287 = vmatprep.subr.mxu0 0.0
    %1288 = vmatpush2.msra.mxu0 0.0
    %1289 = vmatprep.subr.mxu0 0.0
    %1290 = vmatpush2.msra.mxu0 0.0
    %1291 = vmatprep.subr.mxu0 0.0
    %1292 = vmatpush2.msra.mxu0 0.0
    %1293 = vmatprep.subr.mxu0 0.0
    %1294 = vmatpush2.msra.mxu0 0.0
    %1295 = vmatprep.subr.mxu0 0.0
    %1296 = vmatpush2.msra.mxu0 0.0
    %1297 = vmatprep.subr.mxu0 0.0
    %1298 = vmatpush2.msra.mxu0 0.0
    %1299 = vmatprep.subr.mxu0 0.0
    %1300 = vmatpush2.msra.mxu0 0.0
    %1301 = vmatprep.subr.mxu0 0.0
    %1302 = vmatpush2.msra.mxu0 0.0
    %1303 = vmatprep.subr.mxu0 0.0
    %1304 = vmatpush2.msra.mxu0 0.0
    %1305 = vmatprep.subr.mxu0 0.0
    %1306 = vmatpush2.msra.mxu0 0.0
    %1307 = vmatprep.subr.mxu0 0.0
    %1308 = vmatpush2.msra.mxu0 0.0
    %1309 = vmatprep.mubr.f32.mxu0 0.0
    %1310 = vmatmul.mubr.f32.gmra.mxu0 %v542
    %v1311 = vpop.f32.mrf.mxu0
    %v1312 = vadd.f32 %v1227, %v1311
    %v1313 = vpop.f32.mrf.mxu0
    %1314 = vmatprep.mubr.f32.mxu0 0.0
    %1315 = vmatmul.mubr.f32.gmra.mxu0 %v545
    %v1316 = vpop.f32.mrf.mxu0
    %v1317 = vadd.f32 %v1232, %v1316
    %v1318 = vpop.f32.mrf.mxu0
    %1319 = vmatprep.mubr.f32.mxu0 0.0
    %1320 = vmatmul.mubr.f32.gmra.mxu0 %v548
    %v1321 = vpop.f32.mrf.mxu0
    %v1322 = vadd.f32 %v1237, %v1321
    %v1323 = vpop.f32.mrf.mxu0
    %1324 = vmatprep.mubr.f32.mxu0 0.0
    %1325 = vmatmul.mubr.f32.gmra.mxu0 %v551
    %v1326 = vpop.f32.mrf.mxu0
    %v1327 = vadd.f32 %v1242, %v1326
    %v1328 = vpop.f32.mrf.mxu0
    %1329 = vdwg.mxu0
    %v1331 = vsel %vm29, %v1156, 0
    %v1334 = vsel %vm29, %v1157, 0
    %v1337 = vsel %vm29, %v1158, 0
    %v1340 = vsel %vm29, %v1159, 0
    %1342 = vmatprep.subr.mxu0 0.0
    %1343 = vmatpush1.msra.mxu0 0.0
    %1344 = vmatprep.subr.mxu0 0.0
    %1345 = vmatpush1.msra.mxu0 0.0
    %1346 = vmatprep.subr.mxu0 0.0
    %1347 = vmatpush1.msra.mxu0 0.0
    %1348 = vmatprep.subr.mxu0 0.0
    %1349 = vmatpush1.msra.mxu0 0.0
    %1350 = vmatprep.subr.mxu0 0.0
    %1351 = vmatpush1.msra.mxu0 0.0
    %1352 = vmatprep.subr.mxu0 0.0
    %1353 = vmatpush1.msra.mxu0 0.0
    %1354 = vmatprep.subr.mxu0 0.0
    %1355 = vmatpush1.msra.mxu0 0.0
    %1356 = vmatprep.subr.mxu0 0.0
    %1357 = vmatpush1.msra.mxu0 0.0
    %1358 = vmatprep.subr.mxu0 0.0
    %1359 = vmatpush1.msra.mxu0 0.0
    %1360 = vmatprep.subr.mxu0 0.0
    %1361 = vmatpush1.msra.mxu0 0.0
    %1362 = vmatprep.subr.mxu0 0.0
    %1363 = vmatpush1.msra.mxu0 0.0
    %1364 = vmatprep.subr.mxu0 0.0
    %1365 = vmatpush1.msra.mxu0 0.0
    %1366 = vmatprep.subr.mxu0 0.0
    %1367 = vmatpush1.msra.mxu0 %v89
    %1368 = vmatprep.subr.mxu0 0.0
    %1369 = vmatpush1.msra.mxu0 %v88
    %1370 = vmatprep.subr.mxu0 0.0
    %1371 = vmatpush1.msra.mxu0 %v87
    %1372 = vmatprep.subr.mxu0 0.0
    %1373 = vmatpush1.msra.mxu0 %v86
    %1374 = vmatprep.subr.mxu0 0.0
    %1375 = vmatpush2.msra.mxu0 0.0
    %1376 = vmatprep.subr.mxu0 0.0
    %1377 = vmatpush2.msra.mxu0 0.0
    %1378 = vmatprep.subr.mxu0 0.0
    %1379 = vmatpush2.msra.mxu0 0.0
    %1380 = vmatprep.subr.mxu0 0.0
    %1381 = vmatpush2.msra.mxu0 0.0
    %1382 = vmatprep.subr.mxu0 0.0
    %1383 = vmatpush2.msra.mxu0 0.0
    %1384 = vmatprep.subr.mxu0 0.0
    %1385 = vmatpush2.msra.mxu0 0.0
    %1386 = vmatprep.subr.mxu0 0.0
    %1387 = vmatpush2.msra.mxu0 0.0
    %1388 = vmatprep.subr.mxu0 0.0
    %1389 = vmatpush2.msra.mxu0 0.0
    %1390 = vmatprep.subr.mxu0 0.0
    %1391 = vmatpush2.msra.mxu0 0.0
    %1392 = vmatprep.subr.mxu0 0.0
    %1393 = vmatpush2.msra.mxu0 0.0
    %1394 = vmatprep.subr.mxu0 0.0
    %1395 = vmatpush2.msra.mxu0 0.0
    %1396 = vmatprep.subr.mxu0 0.0
    %1397 = vmatpush2.msra.mxu0 0.0
    %1398 = vmatprep.subr.mxu0 0.0
    %1399 = vmatpush2.msra.mxu0 0.0
    %1400 = vmatprep.subr.mxu0 0.0
    %1401 = vmatpush2.msra.mxu0 0.0
    %1402 = vmatprep.subr.mxu0 0.0
    %1403 = vmatpush2.msra.mxu0 0.0
    %1404 = vmatprep.subr.mxu0 0.0
    %1405 = vmatpush2.msra.mxu0 0.0
    %1406 = vmatprep.mubr.f32.mxu0 0.0
    %1407 = vmatmul.mubr.f32.gmra.mxu0 %v1331
    %v1408 = vpop.f32.mrf.mxu0
    %v1409 = vadd.f32 0.0, %v1408
    %v1410 = vpop.f32.mrf.mxu0
    %1411 = vmatprep.mubr.f32.mxu0 0.0
    %1412 = vmatmul.mubr.f32.gmra.mxu0 %v1334
    %v1413 = vpop.f32.mrf.mxu0
    %v1414 = vadd.f32 0.0, %v1413
    %v1415 = vpop.f32.mrf.mxu0
    %1416 = vmatprep.mubr.f32.mxu0 0.0
    %1417 = vmatmul.mubr.f32.gmra.mxu0 %v1337
    %v1418 = vpop.f32.mrf.mxu0
    %v1419 = vadd.f32 0.0, %v1418
    %v1420 = vpop.f32.mrf.mxu0
    %1421 = vmatprep.mubr.f32.mxu0 0.0
    %1422 = vmatmul.mubr.f32.gmra.mxu0 %v1340
    %v1423 = vpop.f32.mrf.mxu0
    %v1424 = vadd.f32 0.0, %v1423
    %v1425 = vpop.f32.mrf.mxu0
    %1426 = vdwg.mxu0
    %v1427 = vadd.f32 %v1312, %v1409
    %v1428 = vadd.f32 %v1317, %v1414
    %v1429 = vadd.f32 %v1322, %v1419
    %v1430 = vadd.f32 %v1327, %v1424
    %v1431 = vlaneseq
    %v1432 = vshrl.u32 %v1431, 7
    %v1433 = vsub.s32 1, %v1432
    %v1434 = vrot.slane %v59, %v1433
    %v1435 = vadd.f32 %v1427, %v1434
    %v1436 = vadd.f32 %v1428, %v1434
    %v1437 = vadd.f32 %v1429, %v1434
    %v1438 = vadd.f32 %v1430, %v1434
    %v1439 = vmax.f32 %v1435, 0.0
    %v1440 = vmax.f32 %v1436, 0.0
    %v1441 = vmax.f32 %v1437, 0.0
    %v1442 = vmax.f32 %v1438, 0.0
    %1443 = vst.msk [vmem:[#allocation2] sm:$0xff] %vm29, %v1439
    %1444 = vst.msk [vmem:[#allocation2 + $0x8] sm:$0xff] %vm29, %v1440
    %1445 = vst.msk [vmem:[#allocation2 + $0x10] sm:$0xff] %vm29, %v1441
    %1446 = vst.msk [vmem:[#allocation2 + $0x18] sm:$0xff] %vm29, %v1442
    // Predicated region
    $region22: #{tpu_custom_call.1} parent=1 // pred_check
      _
    $region23: #{tpu_custom_call.1} parent=1 // pred_check_branch
      %1448 = sbr.rel (0) target = $region25
    $region24: #{tpu_custom_call.1} parent=1 // pred_region
      %s1450 = ssub.s32 512, 512
      %1451 = vsyncadd [#allocation3], %s1450
      %s1452 = sshll.u32 [#allocation2], 4
      %s1453 = int_to_ptr.vmem [resolvable:$true] %s1452
      %1458 = dma.vmem_to_hbm [thread:$0]  %s1453, 512, %s5, [#allocation3], 128, 128, 8
    $region25: #{tpu_custom_call.1} parent=1 // pred_fallthru
      _
    // Predicated region
    $region26: #{tpu_custom_call.1} parent=1 // pred_check
      _
    $region27: #{tpu_custom_call.1} parent=1 // pred_check_branch
      %1460 = sbr.rel (0) target = $region29
    $region28: #{tpu_custom_call.1} parent=1 // pred_region
      %1461 = dma.done [#allocation3], 512
    $region29: #{tpu_custom_call.1} parent=1 // pred_fallthru
      _
    %1462 = vsyncpa [#allocation3], 1

</llo_original>
